<compile_context>
chip_gen: v6e
topology: v6e:2x2x1
jax: 0.10.0
libtpu: 0.0.40
codegen_flags: <defaults>
</compile_context>

<pallas_src>
import functools

import jax
import jax.numpy as jnp
from jax import lax
from jax.experimental import pallas as pl
from jax.experimental.pallas import tpu as pltpu


def _leaky_relu(x):
    return jnp.where(x >= 0, x, 0.2 * x)


def _conv1x1(y, w, b):
    """Pointwise (1x1) conv as Ci broadcast-FMAs on the VPU.

    y: (Nb, Ci, HW) f32, w: (Co, Ci) f32, b: (1, Co, 1) f32 -> (Nb, Co, HW).
    (Kept on the VPU: with C=8 the MXU would be <1% utilized and an f32 MXU pass
    risks the 1e-4 tolerance on v5e; see perf-review "measure-first" note.)
    """
    _, ci = w.shape
    acc = None
    for c in range(ci):
        term = w[:, c:c + 1][None] * y[:, c:c + 1, :]   # (1,Co,1) * (Nb,1,HW)
        acc = term if acc is None else acc + term
    return acc + b


def _smu_kernel(x_ref, w_in_ref, b_in_ref,
                dwk_ref, dbk_ref, dwv_ref, dbv_ref,
                dwq1_ref, dbq1_ref, wq2_ref, bq2_ref,
                w_out_ref, b_out_ref, o_ref, *, H, W):
    Nb, C, HW = x_ref.shape
    assert HW == H * W
    x = x_ref[...]                                       # (Nb, C, HW) f32

    # --- F.layer_norm(x, [c, h, w]): per-sample, biased var, eps=1e-5 --------
    # One-pass stats: sum(x) and sum(x^2) are independent reductions (overlap),
    # var = E[x^2] - mu^2.  Fine at 1e-4 for unit-scale inputs.
    inv_n = 1.0 / float(C * HW)
    s1 = jnp.sum(x, axis=2, keepdims=True)               # lane reduce
    s2 = jnp.sum(x * x, axis=2, keepdims=True)
    mu = jnp.sum(s1, axis=1, keepdims=True) * inv_n      # (Nb, 1, 1)
    ex2 = jnp.sum(s2, axis=1, keepdims=True) * inv_n
    var = ex2 - mu * mu
    y = (x - mu) * lax.rsqrt(var + 1e-5)                 # rsqrt -> EUP
    del x                                                # residual re-loads x_ref later

    # --- trans_in (1x1 conv) + leaky_relu ------------------------------------
    y = _leaky_relu(_conv1x1(y, w_in_ref[...], b_in_ref[...]))

    # --- shared 9-tap depthwise 3x3 for the k / v / q1 branches --------------
    # Zero-pad the flattened spatial axis once by a lane-aligned 128 on each
    # side (concat writes land on vreg boundaries); every tap is a static lane
    # slice of the padded slab.  Row (H-direction) zeros come from the padding;
    # column (W-direction) zeros from two hoisted full-sublane-width masks.
    PAD = 128
    pad = jnp.zeros((Nb, C, PAD), jnp.float32)
    ypad = jnp.concatenate([pad, y, pad], axis=2)        # (Nb, C, HW + 256)

    col = lax.broadcasted_iota(jnp.int32, (1, C, HW), 2) % W
    m_left = (col != 0).astype(jnp.float32)              # valid source for dj=-1
    m_right = (col != W - 1).astype(jnp.float32)         # valid source for dj=+1

    wk9 = dwk_ref[...]                                   # (9, C, 1)
    wv9 = dwv_ref[...]
    wq9 = dwq1_ref[...]
    acc_k = acc_v = acc_q = None
    tap = 0
    for di in (-1, 0, 1):
        for dj in (-1, 0, 1):
            if di == 0 and dj == 0:
                ys = y                                   # center tap: no shift needed
            else:
                start = PAD + di * W + dj                # static offset
                ys = ypad[:, :, start:start + HW]        # shifted copy, shared by k/v/q1
            if dj == -1:
                ys = ys * m_left
            elif dj == 1:
                ys = ys * m_right
            if acc_k is None:                            # peeled first tap (no zero init)
                acc_k = wk9[tap:tap + 1] * ys
                acc_v = wv9[tap:tap + 1] * ys
                acc_q = wq9[tap:tap + 1] * ys
            else:
                acc_k = acc_k + wk9[tap:tap + 1] * ys
                acc_v = acc_v + wv9[tap:tap + 1] * ys
                acc_q = acc_q + wq9[tap:tap + 1] * ys
            tap += 1

    k = _leaky_relu(acc_k + dbk_ref[...])
    v = _leaky_relu(acc_v + dbv_ref[...])
    q1 = acc_q + dbq1_ref[...]                           # no activation between q1 and q2

    # --- dconv_q2 (1x1, C -> 1) + leaky_relu; q stays a lane-dense row -------
    q = jnp.sum(q1 * wq2_ref[...], axis=1, keepdims=True) + bq2_ref[...]
    q = _leaky_relu(q)                                   # (Nb, 1, HW)

    # --- softmax over the flattened spatial dim (per sample) -----------------
    q = jnp.exp(q - jnp.max(q, axis=2, keepdims=True))
    # exact reciprocal (approx=True is too coarse for the 1e-4 check)
    q = q * pl.reciprocal(jnp.sum(q, axis=2, keepdims=True))

    # --- modulation: sum_hw(q * k) broadcast back onto v ---------------------
    mod = jnp.sum(q * k, axis=2, keepdims=True)          # (Nb, C, 1)
    vm = mod * v

    # --- trans_out (1x1 conv) + leaky_relu + residual ------------------------
    out = _leaky_relu(_conv1x1(vm, w_out_ref[...], b_out_ref[...]))
    o_ref[...] = x_ref[...] + out                        # re-load block (VMEM, no extra DMA)


def _dw9(w, C):
    """(C, 1, 3, 3) depthwise weight -> (9, C, 1), tap index = (di+1)*3+(dj+1)."""
    return jnp.transpose(w[:, 0].reshape(C, 9), (1, 0)).reshape(9, C, 1)


def _num_tensorcores():
    """Best-effort TensorCore count per chip: v7x has 2, v5e/v6e have 1."""
    try:
        kind = jax.devices()[0].device_kind.lower()
    except Exception:
        return 1
    return 2 if "v7" in kind else 1


def smu_pallas(x_nchw, p, samples_per_step=None):
    N, C, H, W = x_nchw.shape
    HW = H * W
    x = x_nchw.reshape(N, C, HW).astype(jnp.float32)     # channels-first, lane-dense

    # ---- weight plumbing (plain JAX glue, outside the kernel) ---------------
    w_in = p["w_in"].reshape(C, C)                       # (Co, Ci)
    b_in = p["b_in"].reshape(1, C, 1)
    dwk, dbk = _dw9(p["w_k"], C), p["b_k"].reshape(1, C, 1)
    dwv, dbv = _dw9(p["w_v"], C), p["b_v"].reshape(1, C, 1)
    dwq1, dbq1 = _dw9(p["w_q1"], C), p["b_q1"].reshape(1, C, 1)
    wq2 = p["w_q2"].reshape(1, C, 1)
    bq2 = p["b_q2"].reshape(1, 1, 1)
    w_out = p["w_out"].reshape(C, C)
    b_out = p["b_out"].reshape(1, C, 1)

    # ---- samples per grid step ----------------------------------------------
    # Cap by vreg/live-set pressure (~28 live vregs per sample through the tap
    # loop), NOT by a VMEM budget; Nb in the 8-16 range already amortizes the
    # ~600-cycle per-grid-step overhead while staying out of the spill regime.
    if samples_per_step is None:
        NB_MAX = 8
        nb = min(N, NB_MAX)
        # Only force >=2 grid steps on chips with 2 TensorCores (v7x); on
        # single-TC v5e/v6e the grid is a sequential loop and splitting a tiny
        # batch just doubles the fixed per-step overhead.
        if _num_tensorcores() > 1 and N > 1:
            nb = min(nb, pl.cdiv(N, 2))
        samples_per_step = max(1, nb)
    Nb = samples_per_step

    # Pad awkward batch sizes up to a multiple of Nb (zero samples are finite
    # through the whole pipeline) and slice the output, instead of collapsing
    # to Nb=1 / N grid steps for prime N.
    n_pad = pl.cdiv(N, Nb) * Nb
    if n_pad != N:
        x = jnp.concatenate(
            [x, jnp.zeros((n_pad - N, C, HW), jnp.float32)], axis=0)
    grid = (n_pad // Nb,)

    def full(shape):
        return pl.BlockSpec(shape, lambda n: (0,) * len(shape))

    grid_spec = pltpu.PrefetchScalarGridSpec(
        num_scalar_prefetch=0,
        grid=grid,
        in_specs=[
            pl.BlockSpec((Nb, C, HW), lambda n: (n, 0, 0)),
            full((C, C)), full((1, C, 1)),               # trans_in
            full((9, C, 1)), full((1, C, 1)),            # dconv_k
            full((9, C, 1)), full((1, C, 1)),            # dconv_v
            full((9, C, 1)), full((1, C, 1)),            # dconv_q1
            full((1, C, 1)), full((1, 1, 1)),            # dconv_q2
            full((C, C)), full((1, C, 1)),               # trans_out
        ],
        out_specs=pl.BlockSpec((Nb, C, HW), lambda n: (n, 0, 0)),
    )

    kernel = functools.partial(_smu_kernel, H=H, W=W)
    out = pl.pallas_call(
        kernel,
        out_shape=jax.ShapeDtypeStruct((n_pad, C, HW), jnp.float32),
        grid_spec=grid_spec,
        compiler_params=pltpu.CompilerParams(
            dimension_semantics=("parallel",),
        ),
    )(x, w_in, b_in, dwk, dbk, dwv, dbv, dwq1, dbq1, wq2, bq2, w_out, b_out)

    return out[:N].reshape(N, C, H, W)


# ----------------------------------------------------------------------------
# deterministic parameter init (shapes follow the PyTorch module __init__)
# ----------------------------------------------------------------------------
def init_params(key, C):
    ks = jax.random.split(key, 12)
    n = lambda k, s, sc: jax.random.normal(k, s, jnp.float32) * sc
    return {
        "w_in":  n(ks[0],  (C, C, 1, 1), 0.2), "b_in":  n(ks[1],  (C,), 0.05),
        "w_k":   n(ks[2],  (C, 1, 3, 3), 0.2), "b_k":   n(ks[3],  (C,), 0.05),
        "w_v":   n(ks[4],  (C, 1, 3, 3), 0.2), "b_v":   n(ks[5],  (C,), 0.05),
        "w_q1":  n(ks[6],  (C, 1, 3, 3), 0.2), "b_q1":  n(ks[7],  (C,), 0.05),
        "w_q2":  n(ks[8],  (1, C, 1, 1), 0.2), "b_q2":  n(ks[9],  (1,), 0.05),
        "w_out": n(ks[10], (C, C, 1, 1), 0.2), "b_out": n(ks[11], (C,), 0.05),
    }


# ----------------------------------------------------------------------------
# pure-JAX reference (NCHW, matching the PyTorch forward) for correctness check
# ----------------------------------------------------------------------------
def smu_ref(x, p):
    n, c, h, w = x.shape
    lrelu = lambda t: jnp.where(t >= 0, t, 0.2 * t)
    mu = jnp.mean(x, axis=(1, 2, 3), keepdims=True)
    var = jnp.mean((x - mu) ** 2, axis=(1, 2, 3), keepdims=True)
    y = (x - mu) / jnp.sqrt(var + 1e-5)

    def conv1x1(a, wt, b):
        w2 = wt.reshape(wt.shape[0], wt.shape[1])
        return jnp.einsum("nchw,oc->nohw", a, w2) + b[None, :, None, None]

    def dconv(a, wt, b):
        out = lax.conv_general_dilated(
            a, wt, (1, 1), ((1, 1), (1, 1)),
            dimension_numbers=("NCHW", "OIHW", "NCHW"),
            feature_group_count=c)
        return out + b[None, :, None, None]

    y = lrelu(conv1x1(y, p["w_in"], p["b_in"]))
    k = lrelu(dconv(y, p["w_k"], p["b_k"]))
    v = lrelu(dconv(y, p["w_v"], p["b_v"]))
    q = lrelu(conv1x1(dconv(y, p["w_q1"], p["b_q1"]), p["w_q2"], p["b_q2"]))
    q = jax.nn.softmax(q.reshape(n, 1, h * w), axis=2)
    kf = k.reshape(n, c, h * w)
    vf = v.reshape(n, c, h * w)
    mod = jnp.sum(q * kf, axis=2, keepdims=True)
    vm = (mod * vf).reshape(n, c, h, w)
    out = lrelu(conv1x1(vm, p["w_out"], p["b_out"]))
    return x + out


if __name__ == "__main__":
    key = jax.random.PRNGKey(0)
    kx, kp, kx2 = jax.random.split(key, 3)

    N, C, H, W = 2, 8, 16, 16
    x = jax.random.normal(kx, (N, C, H, W), jnp.float32)
    params = init_params(kp, C)

    # default heuristic path (single grid step on v5e/v6e, split on v7x)
    out = jax.block_until_ready(smu_pallas(x, params))
    ref = jax.block_until_ready(smu_ref(x, params))
    assert out.shape == x.shape and out.dtype == jnp.float32
    err = float(jnp.max(jnp.abs(out - ref)))
    if not jnp.allclose(out, ref, atol=1e-4, rtol=1e-4):
        raise AssertionError(f"Pallas SMU mismatch vs reference (N=2), max abs err = {err}")

    # exercise the batch-padding + multi-grid-step path (N=6, Nb=4 -> pad to 8, grid=(2,))
    x2 = jax.random.normal(kx2, (6, C, H, W), jnp.float32)
    out2 = jax.block_until_ready(smu_pallas(x2, params, samples_per_step=4))
    ref2 = jax.block_until_ready(smu_ref(x2, params))
    err2 = float(jnp.max(jnp.abs(out2 - ref2)))
    if not jnp.allclose(out2, ref2, atol=1e-4, rtol=1e-4):
        raise AssertionError(f"Pallas SMU mismatch vs reference (N=6, padded), max abs err = {err2}")

    print("KERNEL_OK")
</pallas_src>

<mosaic_0001>
module attributes {stable_mosaic.version = 11 : i64} {
  func.func @_smu_kernel(%arg0: i32, %arg1: memref<2x8x256xf32, #tpu.memory_space<vmem>>, %arg2: memref<8x8xf32, #tpu.memory_space<vmem>>, %arg3: memref<1x8x1xf32, #tpu.memory_space<vmem>>, %arg4: memref<9x8x1xf32, #tpu.memory_space<vmem>>, %arg5: memref<1x8x1xf32, #tpu.memory_space<vmem>>, %arg6: memref<9x8x1xf32, #tpu.memory_space<vmem>>, %arg7: memref<1x8x1xf32, #tpu.memory_space<vmem>>, %arg8: memref<9x8x1xf32, #tpu.memory_space<vmem>>, %arg9: memref<1x8x1xf32, #tpu.memory_space<vmem>>, %arg10: memref<1x8x1xf32, #tpu.memory_space<vmem>>, %arg11: memref<1x1x1xf32, #tpu.memory_space<vmem>>, %arg12: memref<8x8xf32, #tpu.memory_space<vmem>>, %arg13: memref<1x8x1xf32, #tpu.memory_space<vmem>>, %arg14: memref<2x8x256xf32, #tpu.memory_space<vmem>>) attributes {dimension_semantics = [#tpu.dimension_semantics<parallel>], iteration_bounds = array<i64: 1>, scalar_prefetch = 0 : i64, scratch_operands = 0 : i64, tpu.core_type = #tpu.core_type<tc>, window_params = [{transform_indices = @transform_0, window_bounds = array<i64: 2, 8, 256>}, {pipeline_mode = #tpu.pipeline_mode<synchronous>, transform_indices = @transform_1, window_bounds = array<i64: 8, 8>}, {pipeline_mode = #tpu.pipeline_mode<synchronous>, transform_indices = @transform_2, window_bounds = array<i64: 1, 8, 1>}, {pipeline_mode = #tpu.pipeline_mode<synchronous>, transform_indices = @transform_3, window_bounds = array<i64: 9, 8, 1>}, {pipeline_mode = #tpu.pipeline_mode<synchronous>, transform_indices = @transform_4, window_bounds = array<i64: 1, 8, 1>}, {pipeline_mode = #tpu.pipeline_mode<synchronous>, transform_indices = @transform_5, window_bounds = array<i64: 9, 8, 1>}, {pipeline_mode = #tpu.pipeline_mode<synchronous>, transform_indices = @transform_6, window_bounds = array<i64: 1, 8, 1>}, {pipeline_mode = #tpu.pipeline_mode<synchronous>, transform_indices = @transform_7, window_bounds = array<i64: 9, 8, 1>}, {pipeline_mode = #tpu.pipeline_mode<synchronous>, transform_indices = @transform_8, window_bounds = array<i64: 1, 8, 1>}, {pipeline_mode = #tpu.pipeline_mode<synchronous>, transform_indices = @transform_9, window_bounds = array<i64: 1, 8, 1>}, {pipeline_mode = #tpu.pipeline_mode<synchronous>, transform_indices = @transform_10, window_bounds = array<i64: 1, 1, 1>}, {pipeline_mode = #tpu.pipeline_mode<synchronous>, transform_indices = @transform_11, window_bounds = array<i64: 8, 8>}, {pipeline_mode = #tpu.pipeline_mode<synchronous>, transform_indices = @transform_12, window_bounds = array<i64: 1, 8, 1>}, {transform_indices = @transform_13, window_bounds = array<i64: 2, 8, 256>}]} {
    %c0 = arith.constant 0 : index
    %c0_0 = arith.constant 0 : index
    %c0_1 = arith.constant 0 : index
    %0 = vector.load %arg1[%c0, %c0_0, %c0_1] : memref<2x8x256xf32, #tpu.memory_space<vmem>>, vector<2x8x256xf32>
    %cst = arith.constant dense<0.000000e+00> : vector<2x8xf32>
    %1 = vector.multi_reduction <add>, %0, %cst [2] : vector<2x8x256xf32> to vector<2x8xf32>
    %2 = vector.shape_cast %1 : vector<2x8xf32> to vector<2x8x1xf32>
    %3 = arith.mulf %0, %0 : vector<2x8x256xf32>
    %cst_2 = arith.constant dense<0.000000e+00> : vector<2x8xf32>
    %4 = vector.multi_reduction <add>, %3, %cst_2 [2] : vector<2x8x256xf32> to vector<2x8xf32>
    %5 = vector.shape_cast %4 : vector<2x8xf32> to vector<2x8x1xf32>
    %cst_3 = arith.constant dense<0.000000e+00> : vector<2x1xf32>
    %6 = vector.multi_reduction <add>, %2, %cst_3 [1] : vector<2x8x1xf32> to vector<2x1xf32>
    %7 = vector.shape_cast %6 : vector<2x1xf32> to vector<2x1x1xf32>
    %cst_4 = arith.constant 4.8828125E-4 : f32
    %8 = vector.broadcast %cst_4 : f32 to vector<2x1x1xf32>
    %9 = arith.mulf %7, %8 : vector<2x1x1xf32>
    %cst_5 = arith.constant dense<0.000000e+00> : vector<2x1xf32>
    %10 = vector.multi_reduction <add>, %5, %cst_5 [1] : vector<2x8x1xf32> to vector<2x1xf32>
    %11 = vector.shape_cast %10 : vector<2x1xf32> to vector<2x1x1xf32>
    %cst_6 = arith.constant 4.8828125E-4 : f32
    %12 = vector.broadcast %cst_6 : f32 to vector<2x1x1xf32>
    %13 = arith.mulf %11, %12 : vector<2x1x1xf32>
    %14 = arith.mulf %9, %9 : vector<2x1x1xf32>
    %15 = arith.subf %13, %14 : vector<2x1x1xf32>
    %16 = vector.broadcast %9 : vector<2x1x1xf32> to vector<2x8x256xf32>
    %17 = arith.subf %0, %16 : vector<2x8x256xf32>
    %cst_7 = arith.constant 9.99999974E-6 : f32
    %18 = vector.broadcast %cst_7 : f32 to vector<2x1x1xf32>
    %19 = arith.addf %15, %18 : vector<2x1x1xf32>
    %20 = math.rsqrt %19 : vector<2x1x1xf32>
    %21 = vector.broadcast %20 : vector<2x1x1xf32> to vector<2x8x256xf32>
    %22 = arith.mulf %17, %21 : vector<2x8x256xf32>
    %c0_8 = arith.constant 0 : index
    %c0_9 = arith.constant 0 : index
    %23 = vector.load %arg2[%c0_8, %c0_9] : memref<8x8xf32, #tpu.memory_space<vmem>>, vector<8x8xf32>
    %c0_10 = arith.constant 0 : index
    %c0_11 = arith.constant 0 : index
    %c0_12 = arith.constant 0 : index
    %24 = vector.load %arg3[%c0_10, %c0_11, %c0_12] : memref<1x8x1xf32, #tpu.memory_space<vmem>>, vector<1x8x1xf32>
    %25 = vector.extract_strided_slice %23 {offsets = [0, 0], sizes = [8, 1], strides = [1, 1]} : vector<8x8xf32> to vector<8x1xf32>
    %26 = vector.shape_cast %25 : vector<8x1xf32> to vector<1x8x1xf32>
    %27 = vector.extract_strided_slice %22 {offsets = [0, 0, 0], sizes = [2, 1, 256], strides = [1, 1, 1]} : vector<2x8x256xf32> to vector<2x1x256xf32>
    %28 = vector.broadcast %26 : vector<1x8x1xf32> to vector<2x8x256xf32>
    %29 = vector.broadcast %27 : vector<2x1x256xf32> to vector<2x8x256xf32>
    %30 = arith.mulf %28, %29 : vector<2x8x256xf32>
    %31 = vector.extract_strided_slice %23 {offsets = [0, 1], sizes = [8, 1], strides = [1, 1]} : vector<8x8xf32> to vector<8x1xf32>
    %32 = vector.shape_cast %31 : vector<8x1xf32> to vector<1x8x1xf32>
    %33 = vector.extract_strided_slice %22 {offsets = [0, 1, 0], sizes = [2, 1, 256], strides = [1, 1, 1]} : vector<2x8x256xf32> to vector<2x1x256xf32>
    %34 = vector.broadcast %32 : vector<1x8x1xf32> to vector<2x8x256xf32>
    %35 = vector.broadcast %33 : vector<2x1x256xf32> to vector<2x8x256xf32>
    %36 = arith.mulf %34, %35 : vector<2x8x256xf32>
    %37 = arith.addf %30, %36 : vector<2x8x256xf32>
    %38 = vector.extract_strided_slice %23 {offsets = [0, 2], sizes = [8, 1], strides = [1, 1]} : vector<8x8xf32> to vector<8x1xf32>
    %39 = vector.shape_cast %38 : vector<8x1xf32> to vector<1x8x1xf32>
    %40 = vector.extract_strided_slice %22 {offsets = [0, 2, 0], sizes = [2, 1, 256], strides = [1, 1, 1]} : vector<2x8x256xf32> to vector<2x1x256xf32>
    %41 = vector.broadcast %39 : vector<1x8x1xf32> to vector<2x8x256xf32>
    %42 = vector.broadcast %40 : vector<2x1x256xf32> to vector<2x8x256xf32>
    %43 = arith.mulf %41, %42 : vector<2x8x256xf32>
    %44 = arith.addf %37, %43 : vector<2x8x256xf32>
    %45 = vector.extract_strided_slice %23 {offsets = [0, 3], sizes = [8, 1], strides = [1, 1]} : vector<8x8xf32> to vector<8x1xf32>
    %46 = vector.shape_cast %45 : vector<8x1xf32> to vector<1x8x1xf32>
    %47 = vector.extract_strided_slice %22 {offsets = [0, 3, 0], sizes = [2, 1, 256], strides = [1, 1, 1]} : vector<2x8x256xf32> to vector<2x1x256xf32>
    %48 = vector.broadcast %46 : vector<1x8x1xf32> to vector<2x8x256xf32>
    %49 = vector.broadcast %47 : vector<2x1x256xf32> to vector<2x8x256xf32>
    %50 = arith.mulf %48, %49 : vector<2x8x256xf32>
    %51 = arith.addf %44, %50 : vector<2x8x256xf32>
    %52 = vector.extract_strided_slice %23 {offsets = [0, 4], sizes = [8, 1], strides = [1, 1]} : vector<8x8xf32> to vector<8x1xf32>
    %53 = vector.shape_cast %52 : vector<8x1xf32> to vector<1x8x1xf32>
    %54 = vector.extract_strided_slice %22 {offsets = [0, 4, 0], sizes = [2, 1, 256], strides = [1, 1, 1]} : vector<2x8x256xf32> to vector<2x1x256xf32>
    %55 = vector.broadcast %53 : vector<1x8x1xf32> to vector<2x8x256xf32>
    %56 = vector.broadcast %54 : vector<2x1x256xf32> to vector<2x8x256xf32>
    %57 = arith.mulf %55, %56 : vector<2x8x256xf32>
    %58 = arith.addf %51, %57 : vector<2x8x256xf32>
    %59 = vector.extract_strided_slice %23 {offsets = [0, 5], sizes = [8, 1], strides = [1, 1]} : vector<8x8xf32> to vector<8x1xf32>
    %60 = vector.shape_cast %59 : vector<8x1xf32> to vector<1x8x1xf32>
    %61 = vector.extract_strided_slice %22 {offsets = [0, 5, 0], sizes = [2, 1, 256], strides = [1, 1, 1]} : vector<2x8x256xf32> to vector<2x1x256xf32>
    %62 = vector.broadcast %60 : vector<1x8x1xf32> to vector<2x8x256xf32>
    %63 = vector.broadcast %61 : vector<2x1x256xf32> to vector<2x8x256xf32>
    %64 = arith.mulf %62, %63 : vector<2x8x256xf32>
    %65 = arith.addf %58, %64 : vector<2x8x256xf32>
    %66 = vector.extract_strided_slice %23 {offsets = [0, 6], sizes = [8, 1], strides = [1, 1]} : vector<8x8xf32> to vector<8x1xf32>
    %67 = vector.shape_cast %66 : vector<8x1xf32> to vector<1x8x1xf32>
    %68 = vector.extract_strided_slice %22 {offsets = [0, 6, 0], sizes = [2, 1, 256], strides = [1, 1, 1]} : vector<2x8x256xf32> to vector<2x1x256xf32>
    %69 = vector.broadcast %67 : vector<1x8x1xf32> to vector<2x8x256xf32>
    %70 = vector.broadcast %68 : vector<2x1x256xf32> to vector<2x8x256xf32>
    %71 = arith.mulf %69, %70 : vector<2x8x256xf32>
    %72 = arith.addf %65, %71 : vector<2x8x256xf32>
    %73 = vector.extract_strided_slice %23 {offsets = [0, 7], sizes = [8, 1], strides = [1, 1]} : vector<8x8xf32> to vector<8x1xf32>
    %74 = vector.shape_cast %73 : vector<8x1xf32> to vector<1x8x1xf32>
    %75 = vector.extract_strided_slice %22 {offsets = [0, 7, 0], sizes = [2, 1, 256], strides = [1, 1, 1]} : vector<2x8x256xf32> to vector<2x1x256xf32>
    %76 = vector.broadcast %74 : vector<1x8x1xf32> to vector<2x8x256xf32>
    %77 = vector.broadcast %75 : vector<2x1x256xf32> to vector<2x8x256xf32>
    %78 = arith.mulf %76, %77 : vector<2x8x256xf32>
    %79 = arith.addf %72, %78 : vector<2x8x256xf32>
    %80 = vector.broadcast %24 : vector<1x8x1xf32> to vector<2x8x256xf32>
    %81 = arith.addf %79, %80 : vector<2x8x256xf32>
    %cst_13 = arith.constant 0.000000e+00 : f32
    %82 = vector.broadcast %cst_13 : f32 to vector<2x8x256xf32>
    %83 = arith.cmpf oge, %81, %82 : vector<2x8x256xf32>
    %cst_14 = arith.constant 2.000000e-01 : f32
    %84 = vector.broadcast %cst_14 : f32 to vector<2x8x256xf32>
    %85 = arith.mulf %84, %81 : vector<2x8x256xf32>
    %86 = arith.select %83, %81, %85 : vector<2x8x256xi1>, vector<2x8x256xf32>
    %cst_15 = arith.constant 0.000000e+00 : f32
    %87 = vector.broadcast %cst_15 : f32 to vector<2x8x128xf32>
    %88 = tpu.concatenate %87, %86, %87 in 2 : vector<2x8x128xf32>, vector<2x8x256xf32>, vector<2x8x128xf32> -> vector<2x8x512xf32>
    %89 = tpu.iota {dimensions = array<i32: 2>} : vector<1x8x256xi32>
    %c16_i32 = arith.constant 16 : i32
    %c0_i32 = arith.constant 0 : i32
    %90 = arith.cmpi eq, %c16_i32, %c0_i32 : i32
    %c1_i32 = arith.constant 1 : i32
    %91 = arith.select %90, %c1_i32, %c16_i32 : i32
    %92 = vector.broadcast %91 : i32 to vector<1x8x256xi32>
    %93 = arith.remsi %89, %92 : vector<1x8x256xi32>
    %c0_i32_16 = arith.constant 0 : i32
    %94 = vector.broadcast %c0_i32_16 : i32 to vector<1x8x256xi32>
    %95 = arith.cmpi ne, %93, %94 : vector<1x8x256xi32>
    %c0_i32_17 = arith.constant 0 : i32
    %96 = vector.broadcast %c0_i32_17 : i32 to vector<1x8x256xi32>
    %97 = arith.cmpi slt, %93, %96 : vector<1x8x256xi32>
    %c0_i32_18 = arith.constant 0 : i32
    %98 = arith.cmpi slt, %91, %c0_i32_18 : i32
    %99 = vector.broadcast %98 : i1 to vector<1x8x256xi1>
    %100 = vector.broadcast %99 : vector<1x8x256xi1> to vector<1x8x256xi1>
    %101 = arith.xori %97, %100 : vector<1x8x256xi1>
    %102 = arith.andi %101, %95 : vector<1x8x256xi1>
    %103 = vector.broadcast %91 : i32 to vector<1x8x256xi32>
    %104 = arith.addi %93, %103 : vector<1x8x256xi32>
    %105 = arith.select %102, %104, %93 : vector<1x8x256xi1>, vector<1x8x256xi32>
    %c0_i32_19 = arith.constant 0 : i32
    %106 = vector.broadcast %c0_i32_19 : i32 to vector<1x8x256xi32>
    %107 = arith.cmpi ne, %105, %106 : vector<1x8x256xi32>
    %108 = arith.extui %107 : vector<1x8x256xi1> to vector<1x8x256xi32>
    %109 = arith.sitofp %108 : vector<1x8x256xi32> to vector<1x8x256xf32>
    %c15_i32 = arith.constant 15 : i32
    %110 = vector.broadcast %c15_i32 : i32 to vector<1x8x256xi32>
    %111 = arith.cmpi ne, %105, %110 : vector<1x8x256xi32>
    %112 = arith.extui %111 : vector<1x8x256xi1> to vector<1x8x256xi32>
    %113 = arith.sitofp %112 : vector<1x8x256xi32> to vector<1x8x256xf32>
    %c0_20 = arith.constant 0 : index
    %c0_21 = arith.constant 0 : index
    %c0_22 = arith.constant 0 : index
    %114 = vector.load %arg4[%c0_20, %c0_21, %c0_22] : memref<9x8x1xf32, #tpu.memory_space<vmem>>, vector<9x8x1xf32>
    %c0_23 = arith.constant 0 : index
    %c0_24 = arith.constant 0 : index
    %c0_25 = arith.constant 0 : index
    %115 = vector.load %arg6[%c0_23, %c0_24, %c0_25] : memref<9x8x1xf32, #tpu.memory_space<vmem>>, vector<9x8x1xf32>
    %c0_26 = arith.constant 0 : index
    %c0_27 = arith.constant 0 : index
    %c0_28 = arith.constant 0 : index
    %116 = vector.load %arg8[%c0_26, %c0_27, %c0_28] : memref<9x8x1xf32, #tpu.memory_space<vmem>>, vector<9x8x1xf32>
    %117 = vector.extract_strided_slice %88 {offsets = [0, 0, 111], sizes = [2, 8, 256], strides = [1, 1, 1]} : vector<2x8x512xf32> to vector<2x8x256xf32>
    %118 = vector.broadcast %109 : vector<1x8x256xf32> to vector<2x8x256xf32>
    %119 = arith.mulf %117, %118 : vector<2x8x256xf32>
    %120 = vector.extract_strided_slice %114 {offsets = [0, 0, 0], sizes = [1, 8, 1], strides = [1, 1, 1]} : vector<9x8x1xf32> to vector<1x8x1xf32>
    %121 = vector.broadcast %120 : vector<1x8x1xf32> to vector<2x8x256xf32>
    %122 = arith.mulf %121, %119 : vector<2x8x256xf32>
    %123 = vector.extract_strided_slice %115 {offsets = [0, 0, 0], sizes = [1, 8, 1], strides = [1, 1, 1]} : vector<9x8x1xf32> to vector<1x8x1xf32>
    %124 = vector.broadcast %123 : vector<1x8x1xf32> to vector<2x8x256xf32>
    %125 = arith.mulf %124, %119 : vector<2x8x256xf32>
    %126 = vector.extract_strided_slice %116 {offsets = [0, 0, 0], sizes = [1, 8, 1], strides = [1, 1, 1]} : vector<9x8x1xf32> to vector<1x8x1xf32>
    %127 = vector.broadcast %126 : vector<1x8x1xf32> to vector<2x8x256xf32>
    %128 = arith.mulf %127, %119 : vector<2x8x256xf32>
    %129 = vector.extract_strided_slice %88 {offsets = [0, 0, 112], sizes = [2, 8, 256], strides = [1, 1, 1]} : vector<2x8x512xf32> to vector<2x8x256xf32>
    %130 = vector.extract_strided_slice %114 {offsets = [1, 0, 0], sizes = [1, 8, 1], strides = [1, 1, 1]} : vector<9x8x1xf32> to vector<1x8x1xf32>
    %131 = vector.broadcast %130 : vector<1x8x1xf32> to vector<2x8x256xf32>
    %132 = arith.mulf %131, %129 : vector<2x8x256xf32>
    %133 = arith.addf %122, %132 : vector<2x8x256xf32>
    %134 = vector.extract_strided_slice %115 {offsets = [1, 0, 0], sizes = [1, 8, 1], strides = [1, 1, 1]} : vector<9x8x1xf32> to vector<1x8x1xf32>
    %135 = vector.broadcast %134 : vector<1x8x1xf32> to vector<2x8x256xf32>
    %136 = arith.mulf %135, %129 : vector<2x8x256xf32>
    %137 = arith.addf %125, %136 : vector<2x8x256xf32>
    %138 = vector.extract_strided_slice %116 {offsets = [1, 0, 0], sizes = [1, 8, 1], strides = [1, 1, 1]} : vector<9x8x1xf32> to vector<1x8x1xf32>
    %139 = vector.broadcast %138 : vector<1x8x1xf32> to vector<2x8x256xf32>
    %140 = arith.mulf %139, %129 : vector<2x8x256xf32>
    %141 = arith.addf %128, %140 : vector<2x8x256xf32>
    %142 = vector.extract_strided_slice %88 {offsets = [0, 0, 113], sizes = [2, 8, 256], strides = [1, 1, 1]} : vector<2x8x512xf32> to vector<2x8x256xf32>
    %143 = vector.broadcast %113 : vector<1x8x256xf32> to vector<2x8x256xf32>
    %144 = arith.mulf %142, %143 : vector<2x8x256xf32>
    %145 = vector.extract_strided_slice %114 {offsets = [2, 0, 0], sizes = [1, 8, 1], strides = [1, 1, 1]} : vector<9x8x1xf32> to vector<1x8x1xf32>
    %146 = vector.broadcast %145 : vector<1x8x1xf32> to vector<2x8x256xf32>
    %147 = arith.mulf %146, %144 : vector<2x8x256xf32>
    %148 = arith.addf %133, %147 : vector<2x8x256xf32>
    %149 = vector.extract_strided_slice %115 {offsets = [2, 0, 0], sizes = [1, 8, 1], strides = [1, 1, 1]} : vector<9x8x1xf32> to vector<1x8x1xf32>
    %150 = vector.broadcast %149 : vector<1x8x1xf32> to vector<2x8x256xf32>
    %151 = arith.mulf %150, %144 : vector<2x8x256xf32>
    %152 = arith.addf %137, %151 : vector<2x8x256xf32>
    %153 = vector.extract_strided_slice %116 {offsets = [2, 0, 0], sizes = [1, 8, 1], strides = [1, 1, 1]} : vector<9x8x1xf32> to vector<1x8x1xf32>
    %154 = vector.broadcast %153 : vector<1x8x1xf32> to vector<2x8x256xf32>
    %155 = arith.mulf %154, %144 : vector<2x8x256xf32>
    %156 = arith.addf %141, %155 : vector<2x8x256xf32>
    %157 = vector.extract_strided_slice %88 {offsets = [0, 0, 127], sizes = [2, 8, 256], strides = [1, 1, 1]} : vector<2x8x512xf32> to vector<2x8x256xf32>
    %158 = vector.broadcast %109 : vector<1x8x256xf32> to vector<2x8x256xf32>
    %159 = arith.mulf %157, %158 : vector<2x8x256xf32>
    %160 = vector.extract_strided_slice %114 {offsets = [3, 0, 0], sizes = [1, 8, 1], strides = [1, 1, 1]} : vector<9x8x1xf32> to vector<1x8x1xf32>
    %161 = vector.broadcast %160 : vector<1x8x1xf32> to vector<2x8x256xf32>
    %162 = arith.mulf %161, %159 : vector<2x8x256xf32>
    %163 = arith.addf %148, %162 : vector<2x8x256xf32>
    %164 = vector.extract_strided_slice %115 {offsets = [3, 0, 0], sizes = [1, 8, 1], strides = [1, 1, 1]} : vector<9x8x1xf32> to vector<1x8x1xf32>
    %165 = vector.broadcast %164 : vector<1x8x1xf32> to vector<2x8x256xf32>
    %166 = arith.mulf %165, %159 : vector<2x8x256xf32>
    %167 = arith.addf %152, %166 : vector<2x8x256xf32>
    %168 = vector.extract_strided_slice %116 {offsets = [3, 0, 0], sizes = [1, 8, 1], strides = [1, 1, 1]} : vector<9x8x1xf32> to vector<1x8x1xf32>
    %169 = vector.broadcast %168 : vector<1x8x1xf32> to vector<2x8x256xf32>
    %170 = arith.mulf %169, %159 : vector<2x8x256xf32>
    %171 = arith.addf %156, %170 : vector<2x8x256xf32>
    %172 = vector.extract_strided_slice %114 {offsets = [4, 0, 0], sizes = [1, 8, 1], strides = [1, 1, 1]} : vector<9x8x1xf32> to vector<1x8x1xf32>
    %173 = vector.broadcast %172 : vector<1x8x1xf32> to vector<2x8x256xf32>
    %174 = arith.mulf %173, %86 : vector<2x8x256xf32>
    %175 = arith.addf %163, %174 : vector<2x8x256xf32>
    %176 = vector.extract_strided_slice %115 {offsets = [4, 0, 0], sizes = [1, 8, 1], strides = [1, 1, 1]} : vector<9x8x1xf32> to vector<1x8x1xf32>
    %177 = vector.broadcast %176 : vector<1x8x1xf32> to vector<2x8x256xf32>
    %178 = arith.mulf %177, %86 : vector<2x8x256xf32>
    %179 = arith.addf %167, %178 : vector<2x8x256xf32>
    %180 = vector.extract_strided_slice %116 {offsets = [4, 0, 0], sizes = [1, 8, 1], strides = [1, 1, 1]} : vector<9x8x1xf32> to vector<1x8x1xf32>
    %181 = vector.broadcast %180 : vector<1x8x1xf32> to vector<2x8x256xf32>
    %182 = arith.mulf %181, %86 : vector<2x8x256xf32>
    %183 = arith.addf %171, %182 : vector<2x8x256xf32>
    %184 = vector.extract_strided_slice %88 {offsets = [0, 0, 129], sizes = [2, 8, 256], strides = [1, 1, 1]} : vector<2x8x512xf32> to vector<2x8x256xf32>
    %185 = vector.broadcast %113 : vector<1x8x256xf32> to vector<2x8x256xf32>
    %186 = arith.mulf %184, %185 : vector<2x8x256xf32>
    %187 = vector.extract_strided_slice %114 {offsets = [5, 0, 0], sizes = [1, 8, 1], strides = [1, 1, 1]} : vector<9x8x1xf32> to vector<1x8x1xf32>
    %188 = vector.broadcast %187 : vector<1x8x1xf32> to vector<2x8x256xf32>
    %189 = arith.mulf %188, %186 : vector<2x8x256xf32>
    %190 = arith.addf %175, %189 : vector<2x8x256xf32>
    %191 = vector.extract_strided_slice %115 {offsets = [5, 0, 0], sizes = [1, 8, 1], strides = [1, 1, 1]} : vector<9x8x1xf32> to vector<1x8x1xf32>
    %192 = vector.broadcast %191 : vector<1x8x1xf32> to vector<2x8x256xf32>
    %193 = arith.mulf %192, %186 : vector<2x8x256xf32>
    %194 = arith.addf %179, %193 : vector<2x8x256xf32>
    %195 = vector.extract_strided_slice %116 {offsets = [5, 0, 0], sizes = [1, 8, 1], strides = [1, 1, 1]} : vector<9x8x1xf32> to vector<1x8x1xf32>
    %196 = vector.broadcast %195 : vector<1x8x1xf32> to vector<2x8x256xf32>
    %197 = arith.mulf %196, %186 : vector<2x8x256xf32>
    %198 = arith.addf %183, %197 : vector<2x8x256xf32>
    %199 = vector.extract_strided_slice %88 {offsets = [0, 0, 143], sizes = [2, 8, 256], strides = [1, 1, 1]} : vector<2x8x512xf32> to vector<2x8x256xf32>
    %200 = vector.broadcast %109 : vector<1x8x256xf32> to vector<2x8x256xf32>
    %201 = arith.mulf %199, %200 : vector<2x8x256xf32>
    %202 = vector.extract_strided_slice %114 {offsets = [6, 0, 0], sizes = [1, 8, 1], strides = [1, 1, 1]} : vector<9x8x1xf32> to vector<1x8x1xf32>
    %203 = vector.broadcast %202 : vector<1x8x1xf32> to vector<2x8x256xf32>
    %204 = arith.mulf %203, %201 : vector<2x8x256xf32>
    %205 = arith.addf %190, %204 : vector<2x8x256xf32>
    %206 = vector.extract_strided_slice %115 {offsets = [6, 0, 0], sizes = [1, 8, 1], strides = [1, 1, 1]} : vector<9x8x1xf32> to vector<1x8x1xf32>
    %207 = vector.broadcast %206 : vector<1x8x1xf32> to vector<2x8x256xf32>
    %208 = arith.mulf %207, %201 : vector<2x8x256xf32>
    %209 = arith.addf %194, %208 : vector<2x8x256xf32>
    %210 = vector.extract_strided_slice %116 {offsets = [6, 0, 0], sizes = [1, 8, 1], strides = [1, 1, 1]} : vector<9x8x1xf32> to vector<1x8x1xf32>
    %211 = vector.broadcast %210 : vector<1x8x1xf32> to vector<2x8x256xf32>
    %212 = arith.mulf %211, %201 : vector<2x8x256xf32>
    %213 = arith.addf %198, %212 : vector<2x8x256xf32>
    %214 = vector.extract_strided_slice %88 {offsets = [0, 0, 144], sizes = [2, 8, 256], strides = [1, 1, 1]} : vector<2x8x512xf32> to vector<2x8x256xf32>
    %215 = vector.extract_strided_slice %114 {offsets = [7, 0, 0], sizes = [1, 8, 1], strides = [1, 1, 1]} : vector<9x8x1xf32> to vector<1x8x1xf32>
    %216 = vector.broadcast %215 : vector<1x8x1xf32> to vector<2x8x256xf32>
    %217 = arith.mulf %216, %214 : vector<2x8x256xf32>
    %218 = arith.addf %205, %217 : vector<2x8x256xf32>
    %219 = vector.extract_strided_slice %115 {offsets = [7, 0, 0], sizes = [1, 8, 1], strides = [1, 1, 1]} : vector<9x8x1xf32> to vector<1x8x1xf32>
    %220 = vector.broadcast %219 : vector<1x8x1xf32> to vector<2x8x256xf32>
    %221 = arith.mulf %220, %214 : vector<2x8x256xf32>
    %222 = arith.addf %209, %221 : vector<2x8x256xf32>
    %223 = vector.extract_strided_slice %116 {offsets = [7, 0, 0], sizes = [1, 8, 1], strides = [1, 1, 1]} : vector<9x8x1xf32> to vector<1x8x1xf32>
    %224 = vector.broadcast %223 : vector<1x8x1xf32> to vector<2x8x256xf32>
    %225 = arith.mulf %224, %214 : vector<2x8x256xf32>
    %226 = arith.addf %213, %225 : vector<2x8x256xf32>
    %227 = vector.extract_strided_slice %88 {offsets = [0, 0, 145], sizes = [2, 8, 256], strides = [1, 1, 1]} : vector<2x8x512xf32> to vector<2x8x256xf32>
    %228 = vector.broadcast %113 : vector<1x8x256xf32> to vector<2x8x256xf32>
    %229 = arith.mulf %227, %228 : vector<2x8x256xf32>
    %230 = vector.extract_strided_slice %114 {offsets = [8, 0, 0], sizes = [1, 8, 1], strides = [1, 1, 1]} : vector<9x8x1xf32> to vector<1x8x1xf32>
    %231 = vector.broadcast %230 : vector<1x8x1xf32> to vector<2x8x256xf32>
    %232 = arith.mulf %231, %229 : vector<2x8x256xf32>
    %233 = arith.addf %218, %232 : vector<2x8x256xf32>
    %234 = vector.extract_strided_slice %115 {offsets = [8, 0, 0], sizes = [1, 8, 1], strides = [1, 1, 1]} : vector<9x8x1xf32> to vector<1x8x1xf32>
    %235 = vector.broadcast %234 : vector<1x8x1xf32> to vector<2x8x256xf32>
    %236 = arith.mulf %235, %229 : vector<2x8x256xf32>
    %237 = arith.addf %222, %236 : vector<2x8x256xf32>
    %238 = vector.extract_strided_slice %116 {offsets = [8, 0, 0], sizes = [1, 8, 1], strides = [1, 1, 1]} : vector<9x8x1xf32> to vector<1x8x1xf32>
    %239 = vector.broadcast %238 : vector<1x8x1xf32> to vector<2x8x256xf32>
    %240 = arith.mulf %239, %229 : vector<2x8x256xf32>
    %241 = arith.addf %226, %240 : vector<2x8x256xf32>
    %c0_29 = arith.constant 0 : index
    %c0_30 = arith.constant 0 : index
    %c0_31 = arith.constant 0 : index
    %242 = vector.load %arg5[%c0_29, %c0_30, %c0_31] : memref<1x8x1xf32, #tpu.memory_space<vmem>>, vector<1x8x1xf32>
    %243 = vector.broadcast %242 : vector<1x8x1xf32> to vector<2x8x256xf32>
    %244 = arith.addf %233, %243 : vector<2x8x256xf32>
    %cst_32 = arith.constant 0.000000e+00 : f32
    %245 = vector.broadcast %cst_32 : f32 to vector<2x8x256xf32>
    %246 = arith.cmpf oge, %244, %245 : vector<2x8x256xf32>
    %cst_33 = arith.constant 2.000000e-01 : f32
    %247 = vector.broadcast %cst_33 : f32 to vector<2x8x256xf32>
    %248 = arith.mulf %247, %244 : vector<2x8x256xf32>
    %249 = arith.select %246, %244, %248 : vector<2x8x256xi1>, vector<2x8x256xf32>
    %c0_34 = arith.constant 0 : index
    %c0_35 = arith.constant 0 : index
    %c0_36 = arith.constant 0 : index
    %250 = vector.load %arg7[%c0_34, %c0_35, %c0_36] : memref<1x8x1xf32, #tpu.memory_space<vmem>>, vector<1x8x1xf32>
    %251 = vector.broadcast %250 : vector<1x8x1xf32> to vector<2x8x256xf32>
    %252 = arith.addf %237, %251 : vector<2x8x256xf32>
    %cst_37 = arith.constant 0.000000e+00 : f32
    %253 = vector.broadcast %cst_37 : f32 to vector<2x8x256xf32>
    %254 = arith.cmpf oge, %252, %253 : vector<2x8x256xf32>
    %cst_38 = arith.constant 2.000000e-01 : f32
    %255 = vector.broadcast %cst_38 : f32 to vector<2x8x256xf32>
    %256 = arith.mulf %255, %252 : vector<2x8x256xf32>
    %257 = arith.select %254, %252, %256 : vector<2x8x256xi1>, vector<2x8x256xf32>
    %c0_39 = arith.constant 0 : index
    %c0_40 = arith.constant 0 : index
    %c0_41 = arith.constant 0 : index
    %258 = vector.load %arg9[%c0_39, %c0_40, %c0_41] : memref<1x8x1xf32, #tpu.memory_space<vmem>>, vector<1x8x1xf32>
    %259 = vector.broadcast %258 : vector<1x8x1xf32> to vector<2x8x256xf32>
    %260 = arith.addf %241, %259 : vector<2x8x256xf32>
    %c0_42 = arith.constant 0 : index
    %c0_43 = arith.constant 0 : index
    %c0_44 = arith.constant 0 : index
    %261 = vector.load %arg10[%c0_42, %c0_43, %c0_44] : memref<1x8x1xf32, #tpu.memory_space<vmem>>, vector<1x8x1xf32>
    %262 = vector.broadcast %261 : vector<1x8x1xf32> to vector<2x8x256xf32>
    %263 = arith.mulf %260, %262 : vector<2x8x256xf32>
    %cst_45 = arith.constant dense<0.000000e+00> : vector<2x256xf32>
    %264 = vector.multi_reduction <add>, %263, %cst_45 [1] : vector<2x8x256xf32> to vector<2x256xf32>
    %265 = vector.shape_cast %264 : vector<2x256xf32> to vector<2x1x256xf32>
    %c0_46 = arith.constant 0 : index
    %c0_47 = arith.constant 0 : index
    %c0_48 = arith.constant 0 : index
    %266 = vector.load %arg11[%c0_46, %c0_47, %c0_48] : memref<1x1x1xf32, #tpu.memory_space<vmem>>, vector<1x1x1xf32>
    %267 = vector.broadcast %266 : vector<1x1x1xf32> to vector<2x1x256xf32>
    %268 = arith.addf %265, %267 : vector<2x1x256xf32>
    %cst_49 = arith.constant 0.000000e+00 : f32
    %269 = vector.broadcast %cst_49 : f32 to vector<2x1x256xf32>
    %270 = arith.cmpf oge, %268, %269 : vector<2x1x256xf32>
    %cst_50 = arith.constant 2.000000e-01 : f32
    %271 = vector.broadcast %cst_50 : f32 to vector<2x1x256xf32>
    %272 = arith.mulf %271, %268 : vector<2x1x256xf32>
    %273 = arith.select %270, %268, %272 : vector<2x1x256xi1>, vector<2x1x256xf32>
    %cst_51 = arith.constant dense<0xFF800000> : vector<2x1xf32>
    %274 = vector.multi_reduction <maximumf>, %273, %cst_51 [2] : vector<2x1x256xf32> to vector<2x1xf32>
    %275 = vector.shape_cast %274 : vector<2x1xf32> to vector<2x1x1xf32>
    %276 = vector.broadcast %275 : vector<2x1x1xf32> to vector<2x1x256xf32>
    %277 = arith.subf %273, %276 : vector<2x1x256xf32>
    %278 = math.exp %277 : vector<2x1x256xf32>
    %cst_52 = arith.constant dense<0.000000e+00> : vector<2x1xf32>
    %279 = vector.multi_reduction <add>, %278, %cst_52 [2] : vector<2x1x256xf32> to vector<2x1xf32>
    %280 = vector.shape_cast %279 : vector<2x1xf32> to vector<2x1x1xf32>
    %281 = tpu.reciprocal %280 : vector<2x1x1xf32> -> vector<2x1x1xf32>
    %282 = vector.broadcast %281 : vector<2x1x1xf32> to vector<2x1x256xf32>
    %283 = arith.mulf %278, %282 : vector<2x1x256xf32>
    %284 = vector.broadcast %283 : vector<2x1x256xf32> to vector<2x8x256xf32>
    %285 = arith.mulf %284, %249 : vector<2x8x256xf32>
    %cst_53 = arith.constant dense<0.000000e+00> : vector<2x8xf32>
    %286 = vector.multi_reduction <add>, %285, %cst_53 [2] : vector<2x8x256xf32> to vector<2x8xf32>
    %287 = vector.shape_cast %286 : vector<2x8xf32> to vector<2x8x1xf32>
    %288 = vector.broadcast %287 : vector<2x8x1xf32> to vector<2x8x256xf32>
    %289 = arith.mulf %288, %257 : vector<2x8x256xf32>
    %c0_54 = arith.constant 0 : index
    %c0_55 = arith.constant 0 : index
    %290 = vector.load %arg12[%c0_54, %c0_55] : memref<8x8xf32, #tpu.memory_space<vmem>>, vector<8x8xf32>
    %c0_56 = arith.constant 0 : index
    %c0_57 = arith.constant 0 : index
    %c0_58 = arith.constant 0 : index
    %291 = vector.load %arg13[%c0_56, %c0_57, %c0_58] : memref<1x8x1xf32, #tpu.memory_space<vmem>>, vector<1x8x1xf32>
    %292 = vector.extract_strided_slice %290 {offsets = [0, 0], sizes = [8, 1], strides = [1, 1]} : vector<8x8xf32> to vector<8x1xf32>
    %293 = vector.shape_cast %292 : vector<8x1xf32> to vector<1x8x1xf32>
    %294 = vector.extract_strided_slice %289 {offsets = [0, 0, 0], sizes = [2, 1, 256], strides = [1, 1, 1]} : vector<2x8x256xf32> to vector<2x1x256xf32>
    %295 = vector.broadcast %293 : vector<1x8x1xf32> to vector<2x8x256xf32>
    %296 = vector.broadcast %294 : vector<2x1x256xf32> to vector<2x8x256xf32>
    %297 = arith.mulf %295, %296 : vector<2x8x256xf32>
    %298 = vector.extract_strided_slice %290 {offsets = [0, 1], sizes = [8, 1], strides = [1, 1]} : vector<8x8xf32> to vector<8x1xf32>
    %299 = vector.shape_cast %298 : vector<8x1xf32> to vector<1x8x1xf32>
    %300 = vector.extract_strided_slice %289 {offsets = [0, 1, 0], sizes = [2, 1, 256], strides = [1, 1, 1]} : vector<2x8x256xf32> to vector<2x1x256xf32>
    %301 = vector.broadcast %299 : vector<1x8x1xf32> to vector<2x8x256xf32>
    %302 = vector.broadcast %300 : vector<2x1x256xf32> to vector<2x8x256xf32>
    %303 = arith.mulf %301, %302 : vector<2x8x256xf32>
    %304 = arith.addf %297, %303 : vector<2x8x256xf32>
    %305 = vector.extract_strided_slice %290 {offsets = [0, 2], sizes = [8, 1], strides = [1, 1]} : vector<8x8xf32> to vector<8x1xf32>
    %306 = vector.shape_cast %305 : vector<8x1xf32> to vector<1x8x1xf32>
    %307 = vector.extract_strided_slice %289 {offsets = [0, 2, 0], sizes = [2, 1, 256], strides = [1, 1, 1]} : vector<2x8x256xf32> to vector<2x1x256xf32>
    %308 = vector.broadcast %306 : vector<1x8x1xf32> to vector<2x8x256xf32>
    %309 = vector.broadcast %307 : vector<2x1x256xf32> to vector<2x8x256xf32>
    %310 = arith.mulf %308, %309 : vector<2x8x256xf32>
    %311 = arith.addf %304, %310 : vector<2x8x256xf32>
    %312 = vector.extract_strided_slice %290 {offsets = [0, 3], sizes = [8, 1], strides = [1, 1]} : vector<8x8xf32> to vector<8x1xf32>
    %313 = vector.shape_cast %312 : vector<8x1xf32> to vector<1x8x1xf32>
    %314 = vector.extract_strided_slice %289 {offsets = [0, 3, 0], sizes = [2, 1, 256], strides = [1, 1, 1]} : vector<2x8x256xf32> to vector<2x1x256xf32>
    %315 = vector.broadcast %313 : vector<1x8x1xf32> to vector<2x8x256xf32>
    %316 = vector.broadcast %314 : vector<2x1x256xf32> to vector<2x8x256xf32>
    %317 = arith.mulf %315, %316 : vector<2x8x256xf32>
    %318 = arith.addf %311, %317 : vector<2x8x256xf32>
    %319 = vector.extract_strided_slice %290 {offsets = [0, 4], sizes = [8, 1], strides = [1, 1]} : vector<8x8xf32> to vector<8x1xf32>
    %320 = vector.shape_cast %319 : vector<8x1xf32> to vector<1x8x1xf32>
    %321 = vector.extract_strided_slice %289 {offsets = [0, 4, 0], sizes = [2, 1, 256], strides = [1, 1, 1]} : vector<2x8x256xf32> to vector<2x1x256xf32>
    %322 = vector.broadcast %320 : vector<1x8x1xf32> to vector<2x8x256xf32>
    %323 = vector.broadcast %321 : vector<2x1x256xf32> to vector<2x8x256xf32>
    %324 = arith.mulf %322, %323 : vector<2x8x256xf32>
    %325 = arith.addf %318, %324 : vector<2x8x256xf32>
    %326 = vector.extract_strided_slice %290 {offsets = [0, 5], sizes = [8, 1], strides = [1, 1]} : vector<8x8xf32> to vector<8x1xf32>
    %327 = vector.shape_cast %326 : vector<8x1xf32> to vector<1x8x1xf32>
    %328 = vector.extract_strided_slice %289 {offsets = [0, 5, 0], sizes = [2, 1, 256], strides = [1, 1, 1]} : vector<2x8x256xf32> to vector<2x1x256xf32>
    %329 = vector.broadcast %327 : vector<1x8x1xf32> to vector<2x8x256xf32>
    %330 = vector.broadcast %328 : vector<2x1x256xf32> to vector<2x8x256xf32>
    %331 = arith.mulf %329, %330 : vector<2x8x256xf32>
    %332 = arith.addf %325, %331 : vector<2x8x256xf32>
    %333 = vector.extract_strided_slice %290 {offsets = [0, 6], sizes = [8, 1], strides = [1, 1]} : vector<8x8xf32> to vector<8x1xf32>
    %334 = vector.shape_cast %333 : vector<8x1xf32> to vector<1x8x1xf32>
    %335 = vector.extract_strided_slice %289 {offsets = [0, 6, 0], sizes = [2, 1, 256], strides = [1, 1, 1]} : vector<2x8x256xf32> to vector<2x1x256xf32>
    %336 = vector.broadcast %334 : vector<1x8x1xf32> to vector<2x8x256xf32>
    %337 = vector.broadcast %335 : vector<2x1x256xf32> to vector<2x8x256xf32>
    %338 = arith.mulf %336, %337 : vector<2x8x256xf32>
    %339 = arith.addf %332, %338 : vector<2x8x256xf32>
    %340 = vector.extract_strided_slice %290 {offsets = [0, 7], sizes = [8, 1], strides = [1, 1]} : vector<8x8xf32> to vector<8x1xf32>
    %341 = vector.shape_cast %340 : vector<8x1xf32> to vector<1x8x1xf32>
    %342 = vector.extract_strided_slice %289 {offsets = [0, 7, 0], sizes = [2, 1, 256], strides = [1, 1, 1]} : vector<2x8x256xf32> to vector<2x1x256xf32>
    %343 = vector.broadcast %341 : vector<1x8x1xf32> to vector<2x8x256xf32>
    %344 = vector.broadcast %342 : vector<2x1x256xf32> to vector<2x8x256xf32>
    %345 = arith.mulf %343, %344 : vector<2x8x256xf32>
    %346 = arith.addf %339, %345 : vector<2x8x256xf32>
    %347 = vector.broadcast %291 : vector<1x8x1xf32> to vector<2x8x256xf32>
    %348 = arith.addf %346, %347 : vector<2x8x256xf32>
    %cst_59 = arith.constant 0.000000e+00 : f32
    %349 = vector.broadcast %cst_59 : f32 to vector<2x8x256xf32>
    %350 = arith.cmpf oge, %348, %349 : vector<2x8x256xf32>
    %cst_60 = arith.constant 2.000000e-01 : f32
    %351 = vector.broadcast %cst_60 : f32 to vector<2x8x256xf32>
    %352 = arith.mulf %351, %348 : vector<2x8x256xf32>
    %353 = arith.select %350, %348, %352 : vector<2x8x256xi1>, vector<2x8x256xf32>
    %c0_61 = arith.constant 0 : index
    %c0_62 = arith.constant 0 : index
    %c0_63 = arith.constant 0 : index
    %354 = vector.load %arg1[%c0_61, %c0_62, %c0_63] : memref<2x8x256xf32, #tpu.memory_space<vmem>>, vector<2x8x256xf32>
    %355 = arith.addf %354, %353 : vector<2x8x256xf32>
    %c0_64 = arith.constant 0 : index
    %c0_65 = arith.constant 0 : index
    %c0_66 = arith.constant 0 : index
    %356 = vector.load %arg14[%c0_64, %c0_65, %c0_66] : memref<2x8x256xf32, #tpu.memory_space<vmem>>, vector<2x8x256xf32>
    tpu.vector_store %arg14[%c0_64, %c0_65, %c0_66], %355 {strides = array<i32>} : memref<2x8x256xf32, #tpu.memory_space<vmem>>, vector<2x8x256xf32>,
    return
  }
  func.func @transform_0(%arg0: i32) -> (i32, i32, i32) {
    %c0_i32 = arith.constant 0 : i32
    %c0_i32_0 = arith.constant 0 : i32
    %c0_i32_1 = arith.constant 0 : i32
    return %arg0, %c0_i32, %c0_i32_0 : i32, i32, i32
  }
  func.func @transform_1(%arg0: i32) -> (i32, i32) {
    %c0_i32 = arith.constant 0 : i32
    %c0_i32_0 = arith.constant 0 : i32
    %c0_i32_1 = arith.constant 0 : i32
    return %c0_i32, %c0_i32_0 : i32, i32
  }
  func.func @transform_2(%arg0: i32) -> (i32, i32, i32) {
    %c0_i32 = arith.constant 0 : i32
    %c0_i32_0 = arith.constant 0 : i32
    %c0_i32_1 = arith.constant 0 : i32
    %c0_i32_2 = arith.constant 0 : i32
    return %c0_i32, %c0_i32_0, %c0_i32_1 : i32, i32, i32
  }
  func.func @transform_3(%arg0: i32) -> (i32, i32, i32) {
    %c0_i32 = arith.constant 0 : i32
    %c0_i32_0 = arith.constant 0 : i32
    %c0_i32_1 = arith.constant 0 : i32
    %c0_i32_2 = arith.constant 0 : i32
    return %c0_i32, %c0_i32_0, %c0_i32_1 : i32, i32, i32
  }
  func.func @transform_4(%arg0: i32) -> (i32, i32, i32) {
    %c0_i32 = arith.constant 0 : i32
    %c0_i32_0 = arith.constant 0 : i32
    %c0_i32_1 = arith.constant 0 : i32
    %c0_i32_2 = arith.constant 0 : i32
    return %c0_i32, %c0_i32_0, %c0_i32_1 : i32, i32, i32
  }
  func.func @transform_5(%arg0: i32) -> (i32, i32, i32) {
    %c0_i32 = arith.constant 0 : i32
    %c0_i32_0 = arith.constant 0 : i32
    %c0_i32_1 = arith.constant 0 : i32
    %c0_i32_2 = arith.constant 0 : i32
    return %c0_i32, %c0_i32_0, %c0_i32_1 : i32, i32, i32
  }
  func.func @transform_6(%arg0: i32) -> (i32, i32, i32) {
    %c0_i32 = arith.constant 0 : i32
    %c0_i32_0 = arith.constant 0 : i32
    %c0_i32_1 = arith.constant 0 : i32
    %c0_i32_2 = arith.constant 0 : i32
    return %c0_i32, %c0_i32_0, %c0_i32_1 : i32, i32, i32
  }
  func.func @transform_7(%arg0: i32) -> (i32, i32, i32) {
    %c0_i32 = arith.constant 0 : i32
    %c0_i32_0 = arith.constant 0 : i32
    %c0_i32_1 = arith.constant 0 : i32
    %c0_i32_2 = arith.constant 0 : i32
    return %c0_i32, %c0_i32_0, %c0_i32_1 : i32, i32, i32
  }
  func.func @transform_8(%arg0: i32) -> (i32, i32, i32) {
    %c0_i32 = arith.constant 0 : i32
    %c0_i32_0 = arith.constant 0 : i32
    %c0_i32_1 = arith.constant 0 : i32
    %c0_i32_2 = arith.constant 0 : i32
    return %c0_i32, %c0_i32_0, %c0_i32_1 : i32, i32, i32
  }
  func.func @transform_9(%arg0: i32) -> (i32, i32, i32) {
    %c0_i32 = arith.constant 0 : i32
    %c0_i32_0 = arith.constant 0 : i32
    %c0_i32_1 = arith.constant 0 : i32
    %c0_i32_2 = arith.constant 0 : i32
    return %c0_i32, %c0_i32_0, %c0_i32_1 : i32, i32, i32
  }
  func.func @transform_10(%arg0: i32) -> (i32, i32, i32) {
    %c0_i32 = arith.constant 0 : i32
    %c0_i32_0 = arith.constant 0 : i32
    %c0_i32_1 = arith.constant 0 : i32
    %c0_i32_2 = arith.constant 0 : i32
    return %c0_i32, %c0_i32_0, %c0_i32_1 : i32, i32, i32
  }
  func.func @transform_11(%arg0: i32) -> (i32, i32) {
    %c0_i32 = arith.constant 0 : i32
    %c0_i32_0 = arith.constant 0 : i32
    %c0_i32_1 = arith.constant 0 : i32
    return %c0_i32, %c0_i32_0 : i32, i32
  }
  func.func @transform_12(%arg0: i32) -> (i32, i32, i32) {
    %c0_i32 = arith.constant 0 : i32
    %c0_i32_0 = arith.constant 0 : i32
    %c0_i32_1 = arith.constant 0 : i32
    %c0_i32_2 = arith.constant 0 : i32
    return %c0_i32, %c0_i32_0, %c0_i32_1 : i32, i32, i32
  }
  func.func @transform_13(%arg0: i32) -> (i32, i32, i32) {
    %c0_i32 = arith.constant 0 : i32
    %c0_i32_0 = arith.constant 0 : i32
    %c0_i32_1 = arith.constant 0 : i32
    return %arg0, %c0_i32, %c0_i32_0 : i32, i32, i32
  }
}

</mosaic_0001>

<llo_original>
// kernel: tpu_custom_call.1
$region0: #{tpu_custom_call.1}
  #allocation0 [shape = 'u32[]', space=smem, size = 0x4, offset = 0x4, fixed_abs, tag = 'smem constant byte address 0x4 - core index']
  #allocation1 [shape = 'u32[144,128]{1,0:T(1,128)}', space=vmem, size = 0x12000, scoped, tag = 'internal scratch']
  #allocation2 [shape = 'f32[1,1,1]{2,1,0:T(1,128)S(1)}', space=vmem, size = 0x200, scoped, tag = 'scoped memory for tpu_custom_call.1']
  %s0 = inlined_call_operand.vmem [shape: f32[2,8,256], index: 0, kind: input, shape index: {}]
  %s1 = inlined_call_operand.vmem [shape: f32[8,8], index: 1, kind: input, shape index: {}]
  %s2 = inlined_call_operand.vmem [shape: f32[1,8,1], index: 2, kind: input, shape index: {}]
  %s3 = inlined_call_operand.vmem [shape: f32[9,8,1], index: 3, kind: input, shape index: {}]
  %s4 = inlined_call_operand.vmem [shape: f32[1,8,1], index: 4, kind: input, shape index: {}]
  %s5 = inlined_call_operand.vmem [shape: f32[9,8,1], index: 5, kind: input, shape index: {}]
  %s6 = inlined_call_operand.vmem [shape: f32[1,8,1], index: 6, kind: input, shape index: {}]
  %s7 = inlined_call_operand.vmem [shape: f32[9,8,1], index: 7, kind: input, shape index: {}]
  %s8 = inlined_call_operand.vmem [shape: f32[1,8,1], index: 8, kind: input, shape index: {}]
  %s9 = inlined_call_operand.vmem [shape: f32[1,8,1], index: 9, kind: input, shape index: {}]
  %s10 = inlined_call_operand.<no memory space> [shape: f32[1,1,1], index: 10, kind: input, shape index: {}]
  %s11 = inlined_call_operand.vmem [shape: f32[8,8], index: 11, kind: input, shape index: {}]
  %s12 = inlined_call_operand.vmem [shape: f32[1,8,1], index: 12, kind: input, shape index: {}]
  %s13 = inlined_call_operand.hbm [shape: f32[2,8,256], index: 13, kind: output, shape index: {}]
  %s14 = sld [smem:[#allocation0]]
  $region62: #{tpu_custom_call.1} parent=0
    _
  %s16 = ssub.s32 1, %s14
  %s17 = scalar_select 0, %s16, %s14
  %v18 = vstv %s10
  %19 = vst [vmem:[#allocation2] sm:$0x1] %v18
  $region1: #{tpu_custom_call.1} parent=0
    #allocation3 [shape = 'u8[16384]{0}', space=vmem, size = 0x4000, scoped, tag = 'output window, operand 0, single buffered']
    #allocation4 [shape = 's32[1]{0}', space=sflag, size = 0x4, scoped, tag = 'scoped memory for tpu_custom_call.1']
    %20 = vsyncpa [#allocation4], 0
    // Predicated region
    $region2: #{tpu_custom_call.1} parent=1 // pred_check
      _
    $region3: #{tpu_custom_call.1} parent=1 // pred_check_branch
      %22 = sbr.rel (0) target = $region5
    $region4: #{tpu_custom_call.1} parent=1 // pred_region
      _
    $region5: #{tpu_custom_call.1} parent=1 // pred_fallthru
      _
    // Predicated region
    $region6: #{tpu_custom_call.1} parent=1 // pred_check
      _
    $region7: #{tpu_custom_call.1} parent=1 // pred_check_branch
      %24 = sbr.rel (0) target = $region9
    $region8: #{tpu_custom_call.1} parent=1 // pred_region
      _
    $region9: #{tpu_custom_call.1} parent=1 // pred_fallthru
      _
    // Predicated region
    $region10: #{tpu_custom_call.1} parent=1 // pred_check
      _
    $region11: #{tpu_custom_call.1} parent=1 // pred_check_branch
      %26 = sbr.rel (0) target = $region13
    $region12: #{tpu_custom_call.1} parent=1 // pred_region
      _
    $region13: #{tpu_custom_call.1} parent=1 // pred_fallthru
      _
    // Predicated region
    $region14: #{tpu_custom_call.1} parent=1 // pred_check
      _
    $region15: #{tpu_custom_call.1} parent=1 // pred_check_branch
      %28 = sbr.rel (0) target = $region17
    $region16: #{tpu_custom_call.1} parent=1 // pred_region
      _
    $region17: #{tpu_custom_call.1} parent=1 // pred_fallthru
      _
    // Predicated region
    $region18: #{tpu_custom_call.1} parent=1 // pred_check
      _
    $region19: #{tpu_custom_call.1} parent=1 // pred_check_branch
      %30 = sbr.rel (0) target = $region21
    $region20: #{tpu_custom_call.1} parent=1 // pred_region
      _
    $region21: #{tpu_custom_call.1} parent=1 // pred_fallthru
      _
    // Predicated region
    $region22: #{tpu_custom_call.1} parent=1 // pred_check
      _
    $region23: #{tpu_custom_call.1} parent=1 // pred_check_branch
      %32 = sbr.rel (0) target = $region25
    $region24: #{tpu_custom_call.1} parent=1 // pred_region
      _
    $region25: #{tpu_custom_call.1} parent=1 // pred_fallthru
      _
    // Predicated region
    $region26: #{tpu_custom_call.1} parent=1 // pred_check
      _
    $region27: #{tpu_custom_call.1} parent=1 // pred_check_branch
      %34 = sbr.rel (0) target = $region29
    $region28: #{tpu_custom_call.1} parent=1 // pred_region
      _
    $region29: #{tpu_custom_call.1} parent=1 // pred_fallthru
      _
    // Predicated region
    $region30: #{tpu_custom_call.1} parent=1 // pred_check
      _
    $region31: #{tpu_custom_call.1} parent=1 // pred_check_branch
      %36 = sbr.rel (0) target = $region33
    $region32: #{tpu_custom_call.1} parent=1 // pred_region
      _
    $region33: #{tpu_custom_call.1} parent=1 // pred_fallthru
      _
    // Predicated region
    $region34: #{tpu_custom_call.1} parent=1 // pred_check
      _
    $region35: #{tpu_custom_call.1} parent=1 // pred_check_branch
      %38 = sbr.rel (0) target = $region37
    $region36: #{tpu_custom_call.1} parent=1 // pred_region
      _
    $region37: #{tpu_custom_call.1} parent=1 // pred_fallthru
      _
    // Predicated region
    $region38: #{tpu_custom_call.1} parent=1 // pred_check
      _
    $region39: #{tpu_custom_call.1} parent=1 // pred_check_branch
      %40 = sbr.rel (0) target = $region41
    $region40: #{tpu_custom_call.1} parent=1 // pred_region
      _
    $region41: #{tpu_custom_call.1} parent=1 // pred_fallthru
      _
    // Predicated region
    $region42: #{tpu_custom_call.1} parent=1 // pred_check
      _
    $region43: #{tpu_custom_call.1} parent=1 // pred_check_branch
      %42 = sbr.rel (0) target = $region45
    $region44: #{tpu_custom_call.1} parent=1 // pred_region
      _
    $region45: #{tpu_custom_call.1} parent=1 // pred_fallthru
      _
    // Predicated region
    $region46: #{tpu_custom_call.1} parent=1 // pred_check
      _
    $region47: #{tpu_custom_call.1} parent=1 // pred_check_branch
      %44 = sbr.rel (0) target = $region49
    $region48: #{tpu_custom_call.1} parent=1 // pred_region
      _
    $region49: #{tpu_custom_call.1} parent=1 // pred_fallthru
      _
    // Predicated region
    $region50: #{tpu_custom_call.1} parent=1 // pred_check
      _
    $region51: #{tpu_custom_call.1} parent=1 // pred_check_branch
      %46 = sbr.rel (0) target = $region53
    $region52: #{tpu_custom_call.1} parent=1 // pred_region
      _
    $region53: #{tpu_custom_call.1} parent=1 // pred_fallthru
      _
    %v47 = vld [vmem:[%s0] sm:$0xff]
    %v48 = vld [vmem:[%s0 + $0x8] sm:$0xff]
    %v49 = vld [vmem:[%s0 + $0x10] sm:$0xff]
    %v50 = vld [vmem:[%s0 + $0x18] sm:$0xff]
    %v51 = vadd.f32 %v47, %v48
    %52 = vadd.xlane.f32.xlu0 %v51
    %v53 = vpop.xlane.xlu0 %52
    %v54 = vadd.f32 %v49, %v50
    %55 = vadd.xlane.f32.xlu0 %v54
    %v56 = vpop.xlane.xlu0 %55
    %v57 = vmul.f32 %v47, %v47
    %v58 = vmul.f32 %v48, %v48
    %v59 = vmul.f32 %v49, %v49
    %v60 = vmul.f32 %v50, %v50
    %v61 = vadd.f32 %v57, %v58
    %62 = vadd.xlane.f32.xlu0 %v61
    %v63 = vpop.xlane.xlu0 %62
    %v64 = vadd.f32 %v59, %v60
    %65 = vadd.xlane.f32.xlu0 %v64
    %v66 = vpop.xlane.xlu0 %65
    %v67 = vrot.slane %v53, 4
    %v68 = vadd.f32 %v53, %v67
    %v69 = vrot.slane %v68, 2
    %v70 = vadd.f32 %v68, %v69
    %v71 = vrot.slane %v70, 1
    %v72 = vadd.f32 %v70, %v71
    %v73 = vrot.slane %v56, 4
    %v74 = vadd.f32 %v56, %v73
    %v75 = vrot.slane %v74, 2
    %v76 = vadd.f32 %v74, %v75
    %v77 = vrot.slane %v76, 1
    %v78 = vadd.f32 %v76, %v77
    %v79 = vmul.f32 %v72, 0.00048828125
    %v80 = vmul.f32 %v78, 0.00048828125
    %v81 = vrot.slane %v63, 4
    %v82 = vadd.f32 %v63, %v81
    %v83 = vrot.slane %v82, 2
    %v84 = vadd.f32 %v82, %v83
    %v85 = vrot.slane %v84, 1
    %v86 = vadd.f32 %v84, %v85
    %v87 = vrot.slane %v66, 4
    %v88 = vadd.f32 %v66, %v87
    %v89 = vrot.slane %v88, 2
    %v90 = vadd.f32 %v88, %v89
    %v91 = vrot.slane %v90, 1
    %v92 = vadd.f32 %v90, %v91
    %v93 = vmul.f32 %v86, 0.00048828125
    %v94 = vmul.f32 %v92, 0.00048828125
    %v95 = vmul.f32 %v79, %v79
    %v96 = vmul.f32 %v80, %v80
    %v97 = vsub.f32 %v93, %v95
    %v98 = vsub.f32 %v94, %v96
    %v99 = vsub.f32 %v47, %v79
    %v100 = vsub.f32 %v48, %v79
    %v101 = vsub.f32 %v49, %v80
    %v102 = vsub.f32 %v50, %v80
    %v103 = vadd.f32 %v97, 1e-05
    %v104 = vadd.f32 %v98, 1e-05
    %v105 = vrsqrt.pop %v103
    %v106 = vrsqrt.pop %v104
    %v107 = vmul.f32 %v99, %v105
    %v108 = vmul.f32 %v100, %v105
    %v109 = vmul.f32 %v101, %v106
    %v110 = vmul.f32 %v102, %v106
    %v111 = vld [vmem:[%s1] sm:$0xff]
    %v112 = vld [vmem:[%s2] sm:$0xff]
    %114 = vset.pattern.permute.xlu0 0
    %115 = vperm.xlu0 %114, %v111
    %v116 = vpop.permute.xlu0 %115
    %v118 = vlaneseq
    %v119 = vshrl.u32 %v118, 7
    %v120 = vsub.s32 0, %v119
    %v121 = vrot.slane %v107, %v120
    %v122 = vlaneseq
    %v123 = vshrl.u32 %v122, 7
    %v124 = vsub.s32 0, %v123
    %v125 = vrot.slane %v108, %v124
    %v126 = vlaneseq
    %v127 = vshrl.u32 %v126, 7
    %v128 = vsub.s32 0, %v127
    %v129 = vrot.slane %v109, %v128
    %v130 = vlaneseq
    %v131 = vshrl.u32 %v130, 7
    %v132 = vsub.s32 0, %v131
    %v133 = vrot.slane %v110, %v132
    %v134 = vmul.f32 %v116, %v121
    %v135 = vmul.f32 %v116, %v125
    %v136 = vmul.f32 %v116, %v129
    %v137 = vmul.f32 %v116, %v133
    %138 = vset.pattern.permute.xlu0 1
    %139 = vperm.xlu0 %138, %v111
    %v140 = vpop.permute.xlu0 %139
    %v142 = vlaneseq
    %v143 = vshrl.u32 %v142, 7
    %v144 = vsub.s32 1, %v143
    %v145 = vrot.slane %v107, %v144
    %v146 = vlaneseq
    %v147 = vshrl.u32 %v146, 7
    %v148 = vsub.s32 1, %v147
    %v149 = vrot.slane %v108, %v148
    %v150 = vlaneseq
    %v151 = vshrl.u32 %v150, 7
    %v152 = vsub.s32 1, %v151
    %v153 = vrot.slane %v109, %v152
    %v154 = vlaneseq
    %v155 = vshrl.u32 %v154, 7
    %v156 = vsub.s32 1, %v155
    %v157 = vrot.slane %v110, %v156
    %v158 = vmul.f32 %v140, %v145
    %v159 = vmul.f32 %v140, %v149
    %v160 = vmul.f32 %v140, %v153
    %v161 = vmul.f32 %v140, %v157
    %v162 = vadd.f32 %v134, %v158
    %v163 = vadd.f32 %v135, %v159
    %v164 = vadd.f32 %v136, %v160
    %v165 = vadd.f32 %v137, %v161
    %166 = vset.pattern.permute.xlu0 2
    %167 = vperm.xlu0 %166, %v111
    %v168 = vpop.permute.xlu0 %167
    %v170 = vlaneseq
    %v171 = vshrl.u32 %v170, 7
    %v172 = vsub.s32 2, %v171
    %v173 = vrot.slane %v107, %v172
    %v174 = vlaneseq
    %v175 = vshrl.u32 %v174, 7
    %v176 = vsub.s32 2, %v175
    %v177 = vrot.slane %v108, %v176
    %v178 = vlaneseq
    %v179 = vshrl.u32 %v178, 7
    %v180 = vsub.s32 2, %v179
    %v181 = vrot.slane %v109, %v180
    %v182 = vlaneseq
    %v183 = vshrl.u32 %v182, 7
    %v184 = vsub.s32 2, %v183
    %v185 = vrot.slane %v110, %v184
    %v186 = vmul.f32 %v168, %v173
    %v187 = vmul.f32 %v168, %v177
    %v188 = vmul.f32 %v168, %v181
    %v189 = vmul.f32 %v168, %v185
    %v190 = vadd.f32 %v162, %v186
    %v191 = vadd.f32 %v163, %v187
    %v192 = vadd.f32 %v164, %v188
    %v193 = vadd.f32 %v165, %v189
    %194 = vset.pattern.permute.xlu0 3
    %195 = vperm.xlu0 %194, %v111
    %v196 = vpop.permute.xlu0 %195
    %v198 = vlaneseq
    %v199 = vshrl.u32 %v198, 7
    %v200 = vsub.s32 3, %v199
    %v201 = vrot.slane %v107, %v200
    %v202 = vlaneseq
    %v203 = vshrl.u32 %v202, 7
    %v204 = vsub.s32 3, %v203
    %v205 = vrot.slane %v108, %v204
    %v206 = vlaneseq
    %v207 = vshrl.u32 %v206, 7
    %v208 = vsub.s32 3, %v207
    %v209 = vrot.slane %v109, %v208
    %v210 = vlaneseq
    %v211 = vshrl.u32 %v210, 7
    %v212 = vsub.s32 3, %v211
    %v213 = vrot.slane %v110, %v212
    %v214 = vmul.f32 %v196, %v201
    %v215 = vmul.f32 %v196, %v205
    %v216 = vmul.f32 %v196, %v209
    %v217 = vmul.f32 %v196, %v213
    %v218 = vadd.f32 %v190, %v214
    %v219 = vadd.f32 %v191, %v215
    %v220 = vadd.f32 %v192, %v216
    %v221 = vadd.f32 %v193, %v217
    %222 = vset.pattern.permute.xlu0 4
    %223 = vperm.xlu0 %222, %v111
    %v224 = vpop.permute.xlu0 %223
    %v226 = vlaneseq
    %v227 = vshrl.u32 %v226, 7
    %v228 = vsub.s32 4, %v227
    %v229 = vrot.slane %v107, %v228
    %v230 = vlaneseq
    %v231 = vshrl.u32 %v230, 7
    %v232 = vsub.s32 4, %v231
    %v233 = vrot.slane %v108, %v232
    %v234 = vlaneseq
    %v235 = vshrl.u32 %v234, 7
    %v236 = vsub.s32 4, %v235
    %v237 = vrot.slane %v109, %v236
    %v238 = vlaneseq
    %v239 = vshrl.u32 %v238, 7
    %v240 = vsub.s32 4, %v239
    %v241 = vrot.slane %v110, %v240
    %v242 = vmul.f32 %v224, %v229
    %v243 = vmul.f32 %v224, %v233
    %v244 = vmul.f32 %v224, %v237
    %v245 = vmul.f32 %v224, %v241
    %v246 = vadd.f32 %v218, %v242
    %v247 = vadd.f32 %v219, %v243
    %v248 = vadd.f32 %v220, %v244
    %v249 = vadd.f32 %v221, %v245
    %250 = vset.pattern.permute.xlu0 5
    %251 = vperm.xlu0 %250, %v111
    %v252 = vpop.permute.xlu0 %251
    %v254 = vlaneseq
    %v255 = vshrl.u32 %v254, 7
    %v256 = vsub.s32 5, %v255
    %v257 = vrot.slane %v107, %v256
    %v258 = vlaneseq
    %v259 = vshrl.u32 %v258, 7
    %v260 = vsub.s32 5, %v259
    %v261 = vrot.slane %v108, %v260
    %v262 = vlaneseq
    %v263 = vshrl.u32 %v262, 7
    %v264 = vsub.s32 5, %v263
    %v265 = vrot.slane %v109, %v264
    %v266 = vlaneseq
    %v267 = vshrl.u32 %v266, 7
    %v268 = vsub.s32 5, %v267
    %v269 = vrot.slane %v110, %v268
    %v270 = vmul.f32 %v252, %v257
    %v271 = vmul.f32 %v252, %v261
    %v272 = vmul.f32 %v252, %v265
    %v273 = vmul.f32 %v252, %v269
    %v274 = vadd.f32 %v246, %v270
    %v275 = vadd.f32 %v247, %v271
    %v276 = vadd.f32 %v248, %v272
    %v277 = vadd.f32 %v249, %v273
    %278 = vset.pattern.permute.xlu0 6
    %279 = vperm.xlu0 %278, %v111
    %v280 = vpop.permute.xlu0 %279
    %v282 = vlaneseq
    %v283 = vshrl.u32 %v282, 7
    %v284 = vsub.s32 6, %v283
    %v285 = vrot.slane %v107, %v284
    %v286 = vlaneseq
    %v287 = vshrl.u32 %v286, 7
    %v288 = vsub.s32 6, %v287
    %v289 = vrot.slane %v108, %v288
    %v290 = vlaneseq
    %v291 = vshrl.u32 %v290, 7
    %v292 = vsub.s32 6, %v291
    %v293 = vrot.slane %v109, %v292
    %v294 = vlaneseq
    %v295 = vshrl.u32 %v294, 7
    %v296 = vsub.s32 6, %v295
    %v297 = vrot.slane %v110, %v296
    %v298 = vmul.f32 %v280, %v285
    %v299 = vmul.f32 %v280, %v289
    %v300 = vmul.f32 %v280, %v293
    %v301 = vmul.f32 %v280, %v297
    %v302 = vadd.f32 %v274, %v298
    %v303 = vadd.f32 %v275, %v299
    %v304 = vadd.f32 %v276, %v300
    %v305 = vadd.f32 %v277, %v301
    %306 = vset.pattern.permute.xlu0 7
    %307 = vperm.xlu0 %306, %v111
    %v308 = vpop.permute.xlu0 %307
    %v310 = vlaneseq
    %v311 = vshrl.u32 %v310, 7
    %v312 = vsub.s32 7, %v311
    %v313 = vrot.slane %v107, %v312
    %v314 = vlaneseq
    %v315 = vshrl.u32 %v314, 7
    %v316 = vsub.s32 7, %v315
    %v317 = vrot.slane %v108, %v316
    %v318 = vlaneseq
    %v319 = vshrl.u32 %v318, 7
    %v320 = vsub.s32 7, %v319
    %v321 = vrot.slane %v109, %v320
    %v322 = vlaneseq
    %v323 = vshrl.u32 %v322, 7
    %v324 = vsub.s32 7, %v323
    %v325 = vrot.slane %v110, %v324
    %v326 = vmul.f32 %v308, %v313
    %v327 = vmul.f32 %v308, %v317
    %v328 = vmul.f32 %v308, %v321
    %v329 = vmul.f32 %v308, %v325
    %v330 = vadd.f32 %v302, %v326
    %v331 = vadd.f32 %v303, %v327
    %v332 = vadd.f32 %v304, %v328
    %v333 = vadd.f32 %v305, %v329
    %335 = vset.pattern.permute.xlu0 0
    %336 = vperm.xlu0 %335, %v112
    %v337 = vpop.permute.xlu0 %336
    %v339 = vadd.f32 %v330, %v337
    %v340 = vadd.f32 %v331, %v337
    %v341 = vadd.f32 %v332, %v337
    %v342 = vadd.f32 %v333, %v337
    %vm343 = vcmp.ge.f32.partialorder %v339, 0.0
    %vm344 = vcmp.ge.f32.partialorder %v340, 0.0
    %vm345 = vcmp.ge.f32.partialorder %v341, 0.0
    %vm346 = vcmp.ge.f32.partialorder %v342, 0.0
    %v347 = vmul.f32 %v339, 0.2
    %v348 = vmul.f32 %v340, 0.2
    %v349 = vmul.f32 %v341, 0.2
    %v350 = vmul.f32 %v342, 0.2
    %v351 = vsel %vm343, %v339, %v347
    %v352 = vsel %vm344, %v340, %v348
    %v353 = vsel %vm345, %v341, %v349
    %v354 = vsel %vm346, %v342, %v350
    %v355 = vlaneseq
    %v356 = vand.u32 %v355, 127
    %v357 = vadd.s32 %v356, 128
    %vm358 = vcmp.lt.s32.totalorder %v356, 0
    %v359 = vsub.s32 0, %v356
    %v360 = vsel %vm358, %v359, %v356
    %v361 = vshrl.u32 %v360, 4
    %v362 = vand.u32 %v360, 15
    %v363 = vsub.s32 0, %v362
    %v364 = vsel %vm358, %v363, %v362
    %vm365 = vcmp.lt.s32.totalorder %v357, 0
    %v366 = vsub.s32 0, %v357
    %v367 = vsel %vm365, %v366, %v357
    %v368 = vshrl.u32 %v367, 4
    %v369 = vand.u32 %v367, 15
    %v370 = vsub.s32 0, %v369
    %v371 = vsel %vm365, %v370, %v369
    %vm372 = vcmp.ne.s32.totalorder %v364, 0
    %vm373 = vcmp.ne.s32.totalorder %v371, 0
    %vm374 = vcmp.lt.s32.totalorder %v364, 0
    %vm375 = vcmp.lt.s32.totalorder %v371, 0
    %vm376 = vmand %vm374, %vm372
    %vm377 = vmand %vm375, %vm373
    %v378 = vadd.s32 %v364, 16
    %v379 = vadd.s32 %v371, 16
    %v380 = vsel %vm376, %v378, %v364
    %v381 = vsel %vm377, %v379, %v371
    %vm382 = vcmp.ne.s32.totalorder %v380, 0
    %vm383 = vcmp.ne.s32.totalorder %v381, 0
    %v384 = vsel %vm382, 1, 0
    %v385 = vsel %vm383, 1, 0
    %v386 = vcvt.s32.f32 %v384
    %v387 = vcvt.s32.f32 %v385
    %vm388 = vcmp.ne.s32.totalorder %v380, 15
    %vm389 = vcmp.ne.s32.totalorder %v381, 15
    %v390 = vsel %vm388, 1, 0
    %v391 = vsel %vm389, 1, 0
    %v392 = vcvt.s32.f32 %v390
    %v393 = vcvt.s32.f32 %v391
    %v394 = vld [vmem:[%s3] sm:$0xff]
    %v395 = vld [vmem:[%s3 + $0x8] sm:$0xff]
    %v396 = vld [vmem:[%s3 + $0x10] sm:$0xff]
    %v397 = vld [vmem:[%s3 + $0x18] sm:$0xff]
    %v398 = vld [vmem:[%s3 + $0x20] sm:$0xff]
    %v399 = vld [vmem:[%s3 + $0x28] sm:$0xff]
    %v400 = vld [vmem:[%s3 + $0x30] sm:$0xff]
    %v401 = vld [vmem:[%s3 + $0x38] sm:$0xff]
    %v402 = vld [vmem:[%s3 + $0x40] sm:$0xff]
    %v403 = vld [vmem:[%s5] sm:$0xff]
    %v404 = vld [vmem:[%s5 + $0x8] sm:$0xff]
    %v405 = vld [vmem:[%s5 + $0x10] sm:$0xff]
    %v406 = vld [vmem:[%s5 + $0x18] sm:$0xff]
    %v407 = vld [vmem:[%s5 + $0x20] sm:$0xff]
    %v408 = vld [vmem:[%s5 + $0x28] sm:$0xff]
    %v409 = vld [vmem:[%s5 + $0x30] sm:$0xff]
    %v410 = vld [vmem:[%s5 + $0x38] sm:$0xff]
    %v411 = vld [vmem:[%s5 + $0x40] sm:$0xff]
    %v412 = vld [vmem:[%s7] sm:$0xff]
    %v413 = vld [vmem:[%s7 + $0x8] sm:$0xff]
    %v414 = vld [vmem:[%s7 + $0x10] sm:$0xff]
    %v415 = vld [vmem:[%s7 + $0x18] sm:$0xff]
    %v416 = vld [vmem:[%s7 + $0x20] sm:$0xff]
    %v417 = vld [vmem:[%s7 + $0x28] sm:$0xff]
    %v418 = vld [vmem:[%s7 + $0x30] sm:$0xff]
    %v419 = vld [vmem:[%s7 + $0x38] sm:$0xff]
    %v420 = vld [vmem:[%s7 + $0x40] sm:$0xff]
    %423 = vrot.lane.b32.xlu0 %v386, 111
    %v424 = vpop.permute.xlu0 %423
    %425 = vrot.lane.b32.xlu0 %v387, 111
    %v426 = vpop.permute.xlu0 %425
    %vm427 = vcmask 908288
    %v428 = vsel %vm427, %v424, %v426
    %v432 = vmul.f32 %v424, 0.0
    %v433 = vmul.f32 %v351, %v428
    %v434 = vmul.f32 %v352, %v426
    %v435 = vmul.f32 %v353, %v428
    %v436 = vmul.f32 %v354, %v426
    %438 = vset.pattern.permute.xlu0 0
    %439 = vperm.xlu0 %438, %v394
    %v440 = vpop.permute.xlu0 %439
    %v442 = vmul.f32 %v440, %v432
    %v443 = vmul.f32 %v440, %v433
    %v444 = vmul.f32 %v440, %v434
    %v445 = vmul.f32 %v440, %v435
    %v446 = vmul.f32 %v440, %v436
    %448 = vset.pattern.permute.xlu0 0
    %449 = vperm.xlu0 %448, %v403
    %v450 = vpop.permute.xlu0 %449
    %v452 = vmul.f32 %v450, %v432
    %v453 = vmul.f32 %v450, %v433
    %v454 = vmul.f32 %v450, %v434
    %v455 = vmul.f32 %v450, %v435
    %v456 = vmul.f32 %v450, %v436
    %458 = vset.pattern.permute.xlu0 0
    %459 = vperm.xlu0 %458, %v412
    %v460 = vpop.permute.xlu0 %459
    %v462 = vmul.f32 %v460, %v432
    %v463 = vmul.f32 %v460, %v433
    %v464 = vmul.f32 %v460, %v434
    %v465 = vmul.f32 %v460, %v435
    %v466 = vmul.f32 %v460, %v436
    %468 = vset.pattern.permute.xlu0 0
    %469 = vperm.xlu0 %468, %v395
    %v470 = vpop.permute.xlu0 %469
    %v472 = vmul.f32 %v470, 0.0
    %v473 = vmul.f32 %v470, %v351
    %v474 = vmul.f32 %v470, %v352
    %v475 = vmul.f32 %v470, %v353
    %v476 = vmul.f32 %v470, %v354
    %482 = vrot.lane.b32.xlu0 %v472, 127
    %v483 = vpop.permute.xlu0 %482
    %484 = vrot.lane.b32.xlu0 %v473, 127
    %v485 = vpop.permute.xlu0 %484
    %486 = vrot.lane.b32.xlu0 %v474, 127
    %v487 = vpop.permute.xlu0 %486
    %488 = vrot.lane.b32.xlu0 %v475, 127
    %v489 = vpop.permute.xlu0 %488
    %490 = vrot.lane.b32.xlu0 %v476, 127
    %v491 = vpop.permute.xlu0 %490
    %vm492 = vcmask 1039360
    %v493 = vsel %vm492, %v483, %v485
    %v494 = vsel %vm492, %v485, %v487
    %v495 = vsel %vm492, %v483, %v489
    %v496 = vsel %vm492, %v489, %v491
    %v503 = vadd.f32 %v442, %v493
    %v504 = vadd.f32 %v443, %v494
    %v505 = vadd.f32 %v444, %v487
    %v506 = vadd.f32 %v442, %v495
    %v507 = vadd.f32 %v445, %v496
    %v508 = vadd.f32 %v446, %v491
    %510 = vset.pattern.permute.xlu0 0
    %511 = vperm.xlu0 %510, %v404
    %v512 = vpop.permute.xlu0 %511
    %v514 = vmul.f32 %v512, 0.0
    %v515 = vmul.f32 %v512, %v351
    %v516 = vmul.f32 %v512, %v352
    %v517 = vmul.f32 %v512, %v353
    %v518 = vmul.f32 %v512, %v354
    %524 = vrot.lane.b32.xlu0 %v514, 127
    %v525 = vpop.permute.xlu0 %524
    %526 = vrot.lane.b32.xlu0 %v515, 127
    %v527 = vpop.permute.xlu0 %526
    %528 = vrot.lane.b32.xlu0 %v516, 127
    %v529 = vpop.permute.xlu0 %528
    %530 = vrot.lane.b32.xlu0 %v517, 127
    %v531 = vpop.permute.xlu0 %530
    %532 = vrot.lane.b32.xlu0 %v518, 127
    %v533 = vpop.permute.xlu0 %532
    %v534 = vsel %vm492, %v525, %v527
    %v535 = vsel %vm492, %v527, %v529
    %v536 = vsel %vm492, %v525, %v531
    %v537 = vsel %vm492, %v531, %v533
    %v544 = vadd.f32 %v452, %v534
    %v545 = vadd.f32 %v453, %v535
    %v546 = vadd.f32 %v454, %v529
    %v547 = vadd.f32 %v452, %v536
    %v548 = vadd.f32 %v455, %v537
    %v549 = vadd.f32 %v456, %v533
    %551 = vset.pattern.permute.xlu0 0
    %552 = vperm.xlu0 %551, %v413
    %v553 = vpop.permute.xlu0 %552
    %v555 = vmul.f32 %v553, 0.0
    %v556 = vmul.f32 %v553, %v351
    %v557 = vmul.f32 %v553, %v352
    %v558 = vmul.f32 %v553, %v353
    %v559 = vmul.f32 %v553, %v354
    %565 = vrot.lane.b32.xlu0 %v555, 127
    %v566 = vpop.permute.xlu0 %565
    %567 = vrot.lane.b32.xlu0 %v556, 127
    %v568 = vpop.permute.xlu0 %567
    %569 = vrot.lane.b32.xlu0 %v557, 127
    %v570 = vpop.permute.xlu0 %569
    %571 = vrot.lane.b32.xlu0 %v558, 127
    %v572 = vpop.permute.xlu0 %571
    %573 = vrot.lane.b32.xlu0 %v559, 127
    %v574 = vpop.permute.xlu0 %573
    %v575 = vsel %vm492, %v566, %v568
    %v576 = vsel %vm492, %v568, %v570
    %v577 = vsel %vm492, %v566, %v572
    %v578 = vsel %vm492, %v572, %v574
    %v585 = vadd.f32 %v462, %v575
    %v586 = vadd.f32 %v463, %v576
    %v587 = vadd.f32 %v464, %v570
    %v588 = vadd.f32 %v462, %v577
    %v589 = vadd.f32 %v465, %v578
    %v590 = vadd.f32 %v466, %v574
    %593 = vrot.lane.b32.xlu0 %v392, 113
    %v594 = vpop.permute.xlu0 %593
    %595 = vrot.lane.b32.xlu0 %v393, 113
    %v596 = vpop.permute.xlu0 %595
    %vm597 = vcmask 924672
    %v598 = vsel %vm597, %v594, %v596
    %v602 = vmul.f32 %v594, 0.0
    %v603 = vmul.f32 %v351, %v598
    %v604 = vmul.f32 %v352, %v596
    %v605 = vmul.f32 %v353, %v598
    %v606 = vmul.f32 %v354, %v596
    %608 = vset.pattern.permute.xlu0 0
    %609 = vperm.xlu0 %608, %v396
    %v610 = vpop.permute.xlu0 %609
    %v612 = vmul.f32 %v610, %v602
    %v613 = vmul.f32 %v610, %v603
    %v614 = vmul.f32 %v610, %v604
    %v615 = vmul.f32 %v610, %v605
    %v616 = vmul.f32 %v610, %v606
    %622 = vrot.lane.b32.xlu0 %v612, 126
    %v623 = vpop.permute.xlu0 %622
    %624 = vrot.lane.b32.xlu0 %v613, 126
    %v625 = vpop.permute.xlu0 %624
    %626 = vrot.lane.b32.xlu0 %v614, 126
    %v627 = vpop.permute.xlu0 %626
    %628 = vrot.lane.b32.xlu0 %v615, 126
    %v629 = vpop.permute.xlu0 %628
    %630 = vrot.lane.b32.xlu0 %v616, 126
    %v631 = vpop.permute.xlu0 %630
    %vm632 = vcmask 1031168
    %v633 = vsel %vm632, %v623, %v625
    %v634 = vsel %vm632, %v625, %v627
    %v635 = vsel %vm632, %v623, %v629
    %v636 = vsel %vm632, %v629, %v631
    %v643 = vadd.f32 %v503, %v633
    %v644 = vadd.f32 %v504, %v634
    %v645 = vadd.f32 %v505, %v627
    %v646 = vadd.f32 %v506, %v635
    %v647 = vadd.f32 %v507, %v636
    %v648 = vadd.f32 %v508, %v631
    %650 = vset.pattern.permute.xlu0 0
    %651 = vperm.xlu0 %650, %v405
    %v652 = vpop.permute.xlu0 %651
    %v654 = vmul.f32 %v652, %v602
    %v655 = vmul.f32 %v652, %v603
    %v656 = vmul.f32 %v652, %v604
    %v657 = vmul.f32 %v652, %v605
    %v658 = vmul.f32 %v652, %v606
    %664 = vrot.lane.b32.xlu0 %v654, 126
    %v665 = vpop.permute.xlu0 %664
    %666 = vrot.lane.b32.xlu0 %v655, 126
    %v667 = vpop.permute.xlu0 %666
    %668 = vrot.lane.b32.xlu0 %v656, 126
    %v669 = vpop.permute.xlu0 %668
    %670 = vrot.lane.b32.xlu0 %v657, 126
    %v671 = vpop.permute.xlu0 %670
    %672 = vrot.lane.b32.xlu0 %v658, 126
    %v673 = vpop.permute.xlu0 %672
    %v674 = vsel %vm632, %v665, %v667
    %v675 = vsel %vm632, %v667, %v669
    %v676 = vsel %vm632, %v665, %v671
    %v677 = vsel %vm632, %v671, %v673
    %v684 = vadd.f32 %v544, %v674
    %v685 = vadd.f32 %v545, %v675
    %v686 = vadd.f32 %v546, %v669
    %v687 = vadd.f32 %v547, %v676
    %v688 = vadd.f32 %v548, %v677
    %v689 = vadd.f32 %v549, %v673
    %691 = vset.pattern.permute.xlu0 0
    %692 = vperm.xlu0 %691, %v414
    %v693 = vpop.permute.xlu0 %692
    %v695 = vmul.f32 %v693, %v602
    %v696 = vmul.f32 %v693, %v603
    %v697 = vmul.f32 %v693, %v604
    %v698 = vmul.f32 %v693, %v605
    %v699 = vmul.f32 %v693, %v606
    %705 = vrot.lane.b32.xlu0 %v695, 126
    %v706 = vpop.permute.xlu0 %705
    %707 = vrot.lane.b32.xlu0 %v696, 126
    %v708 = vpop.permute.xlu0 %707
    %709 = vrot.lane.b32.xlu0 %v697, 126
    %v710 = vpop.permute.xlu0 %709
    %711 = vrot.lane.b32.xlu0 %v698, 126
    %v712 = vpop.permute.xlu0 %711
    %713 = vrot.lane.b32.xlu0 %v699, 126
    %v714 = vpop.permute.xlu0 %713
    %v715 = vsel %vm632, %v706, %v708
    %v716 = vsel %vm632, %v708, %v710
    %v717 = vsel %vm632, %v706, %v712
    %v718 = vsel %vm632, %v712, %v714
    %v725 = vadd.f32 %v585, %v715
    %v726 = vadd.f32 %v586, %v716
    %v727 = vadd.f32 %v587, %v710
    %v728 = vadd.f32 %v588, %v717
    %v729 = vadd.f32 %v589, %v718
    %v730 = vadd.f32 %v590, %v714
    %731 = vrot.lane.b32.xlu0 %v386, 127
    %v732 = vpop.permute.xlu0 %731
    %733 = vrot.lane.b32.xlu0 %v387, 127
    %v734 = vpop.permute.xlu0 %733
    %v735 = vsel %vm492, %v732, %v734
    %v739 = vmul.f32 %v732, 0.0
    %v740 = vmul.f32 %v351, %v735
    %v741 = vmul.f32 %v352, %v734
    %v742 = vmul.f32 %v353, %v735
    %v743 = vmul.f32 %v354, %v734
    %745 = vset.pattern.permute.xlu0 0
    %746 = vperm.xlu0 %745, %v397
    %v747 = vpop.permute.xlu0 %746
    %v749 = vmul.f32 %v747, %v739
    %v750 = vmul.f32 %v747, %v740
    %v751 = vmul.f32 %v747, %v741
    %v752 = vmul.f32 %v747, %v742
    %v753 = vmul.f32 %v747, %v743
    %759 = vrot.lane.b32.xlu0 %v749, 112
    %v760 = vpop.permute.xlu0 %759
    %761 = vrot.lane.b32.xlu0 %v750, 112
    %v762 = vpop.permute.xlu0 %761
    %763 = vrot.lane.b32.xlu0 %v751, 112
    %v764 = vpop.permute.xlu0 %763
    %765 = vrot.lane.b32.xlu0 %v752, 112
    %v766 = vpop.permute.xlu0 %765
    %767 = vrot.lane.b32.xlu0 %v753, 112
    %v768 = vpop.permute.xlu0 %767
    %vm769 = vcmask 916480
    %v770 = vsel %vm769, %v760, %v762
    %v771 = vsel %vm769, %v762, %v764
    %v772 = vsel %vm769, %v760, %v766
    %v773 = vsel %vm769, %v766, %v768
    %v780 = vadd.f32 %v643, %v770
    %v781 = vadd.f32 %v644, %v771
    %v782 = vadd.f32 %v645, %v764
    %v783 = vadd.f32 %v646, %v772
    %v784 = vadd.f32 %v647, %v773
    %v785 = vadd.f32 %v648, %v768
    %787 = vset.pattern.permute.xlu0 0
    %788 = vperm.xlu0 %787, %v406
    %v789 = vpop.permute.xlu0 %788
    %v791 = vmul.f32 %v789, %v739
    %v792 = vmul.f32 %v789, %v740
    %v793 = vmul.f32 %v789, %v741
    %v794 = vmul.f32 %v789, %v742
    %v795 = vmul.f32 %v789, %v743
    %801 = vrot.lane.b32.xlu0 %v791, 112
    %v802 = vpop.permute.xlu0 %801
    %803 = vrot.lane.b32.xlu0 %v792, 112
    %v804 = vpop.permute.xlu0 %803
    %805 = vrot.lane.b32.xlu0 %v793, 112
    %v806 = vpop.permute.xlu0 %805
    %807 = vrot.lane.b32.xlu0 %v794, 112
    %v808 = vpop.permute.xlu0 %807
    %809 = vrot.lane.b32.xlu0 %v795, 112
    %v810 = vpop.permute.xlu0 %809
    %v811 = vsel %vm769, %v802, %v804
    %v812 = vsel %vm769, %v804, %v806
    %v813 = vsel %vm769, %v802, %v808
    %v814 = vsel %vm769, %v808, %v810
    %v821 = vadd.f32 %v684, %v811
    %v822 = vadd.f32 %v685, %v812
    %v823 = vadd.f32 %v686, %v806
    %v824 = vadd.f32 %v687, %v813
    %v825 = vadd.f32 %v688, %v814
    %v826 = vadd.f32 %v689, %v810
    %828 = vset.pattern.permute.xlu0 0
    %829 = vperm.xlu0 %828, %v415
    %v830 = vpop.permute.xlu0 %829
    %v832 = vmul.f32 %v830, %v739
    %v833 = vmul.f32 %v830, %v740
    %v834 = vmul.f32 %v830, %v741
    %v835 = vmul.f32 %v830, %v742
    %v836 = vmul.f32 %v830, %v743
    %842 = vrot.lane.b32.xlu0 %v832, 112
    %v843 = vpop.permute.xlu0 %842
    %844 = vrot.lane.b32.xlu0 %v833, 112
    %v845 = vpop.permute.xlu0 %844
    %846 = vrot.lane.b32.xlu0 %v834, 112
    %v847 = vpop.permute.xlu0 %846
    %848 = vrot.lane.b32.xlu0 %v835, 112
    %v849 = vpop.permute.xlu0 %848
    %850 = vrot.lane.b32.xlu0 %v836, 112
    %v851 = vpop.permute.xlu0 %850
    %v852 = vsel %vm769, %v843, %v845
    %v853 = vsel %vm769, %v845, %v847
    %v854 = vsel %vm769, %v843, %v849
    %v855 = vsel %vm769, %v849, %v851
    %v862 = vadd.f32 %v725, %v852
    %v863 = vadd.f32 %v726, %v853
    %v864 = vadd.f32 %v727, %v847
    %v865 = vadd.f32 %v728, %v854
    %v866 = vadd.f32 %v729, %v855
    %v867 = vadd.f32 %v730, %v851
    %869 = vset.pattern.permute.xlu0 0
    %870 = vperm.xlu0 %869, %v398
    %v871 = vpop.permute.xlu0 %870
    %v873 = vmul.f32 %v871, %v351
    %v874 = vmul.f32 %v871, %v352
    %v875 = vmul.f32 %v871, %v353
    %v876 = vmul.f32 %v871, %v354
    %881 = vrot.lane.b32.xlu0 %v873, 111
    %v882 = vpop.permute.xlu0 %881
    %883 = vrot.lane.b32.xlu0 %v874, 111
    %v884 = vpop.permute.xlu0 %883
    %885 = vrot.lane.b32.xlu0 %v875, 111
    %v886 = vpop.permute.xlu0 %885
    %887 = vrot.lane.b32.xlu0 %v876, 111
    %v888 = vpop.permute.xlu0 %887
    %v889 = vsel %vm427, %v882, %v884
    %v890 = vsel %vm427, %v886, %v888
    %v897 = vadd.f32 %v780, %v882
    %v898 = vadd.f32 %v781, %v889
    %v899 = vadd.f32 %v782, %v884
    %v900 = vadd.f32 %v783, %v886
    %v901 = vadd.f32 %v784, %v890
    %v902 = vadd.f32 %v785, %v888
    %904 = vset.pattern.permute.xlu0 0
    %905 = vperm.xlu0 %904, %v407
    %v906 = vpop.permute.xlu0 %905
    %v908 = vmul.f32 %v906, %v351
    %v909 = vmul.f32 %v906, %v352
    %v910 = vmul.f32 %v906, %v353
    %v911 = vmul.f32 %v906, %v354
    %916 = vrot.lane.b32.xlu0 %v908, 111
    %v917 = vpop.permute.xlu0 %916
    %918 = vrot.lane.b32.xlu0 %v909, 111
    %v919 = vpop.permute.xlu0 %918
    %920 = vrot.lane.b32.xlu0 %v910, 111
    %v921 = vpop.permute.xlu0 %920
    %922 = vrot.lane.b32.xlu0 %v911, 111
    %v923 = vpop.permute.xlu0 %922
    %v924 = vsel %vm427, %v917, %v919
    %v925 = vsel %vm427, %v921, %v923
    %v932 = vadd.f32 %v821, %v917
    %v933 = vadd.f32 %v822, %v924
    %v934 = vadd.f32 %v823, %v919
    %v935 = vadd.f32 %v824, %v921
    %v936 = vadd.f32 %v825, %v925
    %v937 = vadd.f32 %v826, %v923
    %939 = vset.pattern.permute.xlu0 0
    %940 = vperm.xlu0 %939, %v416
    %v941 = vpop.permute.xlu0 %940
    %v943 = vmul.f32 %v941, %v351
    %v944 = vmul.f32 %v941, %v352
    %v945 = vmul.f32 %v941, %v353
    %v946 = vmul.f32 %v941, %v354
    %951 = vrot.lane.b32.xlu0 %v943, 111
    %v952 = vpop.permute.xlu0 %951
    %953 = vrot.lane.b32.xlu0 %v944, 111
    %v954 = vpop.permute.xlu0 %953
    %955 = vrot.lane.b32.xlu0 %v945, 111
    %v956 = vpop.permute.xlu0 %955
    %957 = vrot.lane.b32.xlu0 %v946, 111
    %v958 = vpop.permute.xlu0 %957
    %v959 = vsel %vm427, %v952, %v954
    %v960 = vsel %vm427, %v956, %v958
    %v967 = vadd.f32 %v862, %v952
    %v968 = vadd.f32 %v863, %v959
    %v969 = vadd.f32 %v864, %v954
    %v970 = vadd.f32 %v865, %v956
    %v971 = vadd.f32 %v866, %v960
    %v972 = vadd.f32 %v867, %v958
    %973 = vrot.lane.b32.xlu0 %v392, 1
    %v974 = vpop.permute.xlu0 %973
    %975 = vrot.lane.b32.xlu0 %v393, 1
    %v976 = vpop.permute.xlu0 %975
    %vm977 = vcmask 7168
    %v978 = vsel %vm977, %v974, %v976
    %v982 = vmul.f32 %v351, %v974
    %v983 = vmul.f32 %v352, %v978
    %v984 = vmul.f32 %v976, 0.0
    %v985 = vmul.f32 %v353, %v974
    %v986 = vmul.f32 %v354, %v978
    %988 = vset.pattern.permute.xlu0 0
    %989 = vperm.xlu0 %988, %v399
    %v990 = vpop.permute.xlu0 %989
    %v992 = vmul.f32 %v990, %v982
    %v993 = vmul.f32 %v990, %v983
    %v994 = vmul.f32 %v990, %v984
    %v995 = vmul.f32 %v990, %v985
    %v996 = vmul.f32 %v990, %v986
    %1002 = vrot.lane.b32.xlu0 %v992, 110
    %v1003 = vpop.permute.xlu0 %1002
    %1004 = vrot.lane.b32.xlu0 %v993, 110
    %v1005 = vpop.permute.xlu0 %1004
    %1006 = vrot.lane.b32.xlu0 %v994, 110
    %v1007 = vpop.permute.xlu0 %1006
    %1008 = vrot.lane.b32.xlu0 %v995, 110
    %v1009 = vpop.permute.xlu0 %1008
    %1010 = vrot.lane.b32.xlu0 %v996, 110
    %v1011 = vpop.permute.xlu0 %1010
    %vm1012 = vcmask 900096
    %v1013 = vsel %vm1012, %v1003, %v1005
    %v1014 = vsel %vm1012, %v1005, %v1007
    %v1015 = vsel %vm1012, %v1009, %v1011
    %v1016 = vsel %vm1012, %v1011, %v1007
    %v1023 = vadd.f32 %v897, %v1003
    %v1024 = vadd.f32 %v898, %v1013
    %v1025 = vadd.f32 %v899, %v1014
    %v1026 = vadd.f32 %v900, %v1009
    %v1027 = vadd.f32 %v901, %v1015
    %v1028 = vadd.f32 %v902, %v1016
    %1030 = vset.pattern.permute.xlu0 0
    %1031 = vperm.xlu0 %1030, %v408
    %v1032 = vpop.permute.xlu0 %1031
    %v1034 = vmul.f32 %v1032, %v982
    %v1035 = vmul.f32 %v1032, %v983
    %v1036 = vmul.f32 %v1032, %v984
    %v1037 = vmul.f32 %v1032, %v985
    %v1038 = vmul.f32 %v1032, %v986
    %1044 = vrot.lane.b32.xlu0 %v1034, 110
    %v1045 = vpop.permute.xlu0 %1044
    %1046 = vrot.lane.b32.xlu0 %v1035, 110
    %v1047 = vpop.permute.xlu0 %1046
    %1048 = vrot.lane.b32.xlu0 %v1036, 110
    %v1049 = vpop.permute.xlu0 %1048
    %1050 = vrot.lane.b32.xlu0 %v1037, 110
    %v1051 = vpop.permute.xlu0 %1050
    %1052 = vrot.lane.b32.xlu0 %v1038, 110
    %v1053 = vpop.permute.xlu0 %1052
    %v1054 = vsel %vm1012, %v1045, %v1047
    %v1055 = vsel %vm1012, %v1047, %v1049
    %v1056 = vsel %vm1012, %v1051, %v1053
    %v1057 = vsel %vm1012, %v1053, %v1049
    %v1064 = vadd.f32 %v932, %v1045
    %v1065 = vadd.f32 %v933, %v1054
    %v1066 = vadd.f32 %v934, %v1055
    %v1067 = vadd.f32 %v935, %v1051
    %v1068 = vadd.f32 %v936, %v1056
    %v1069 = vadd.f32 %v937, %v1057
    %1071 = vset.pattern.permute.xlu0 0
    %1072 = vperm.xlu0 %1071, %v417
    %v1073 = vpop.permute.xlu0 %1072
    %v1075 = vmul.f32 %v1073, %v982
    %v1076 = vmul.f32 %v1073, %v983
    %v1077 = vmul.f32 %v1073, %v984
    %v1078 = vmul.f32 %v1073, %v985
    %v1079 = vmul.f32 %v1073, %v986
    %1085 = vrot.lane.b32.xlu0 %v1075, 110
    %v1086 = vpop.permute.xlu0 %1085
    %1087 = vrot.lane.b32.xlu0 %v1076, 110
    %v1088 = vpop.permute.xlu0 %1087
    %1089 = vrot.lane.b32.xlu0 %v1077, 110
    %v1090 = vpop.permute.xlu0 %1089
    %1091 = vrot.lane.b32.xlu0 %v1078, 110
    %v1092 = vpop.permute.xlu0 %1091
    %1093 = vrot.lane.b32.xlu0 %v1079, 110
    %v1094 = vpop.permute.xlu0 %1093
    %v1095 = vsel %vm1012, %v1086, %v1088
    %v1096 = vsel %vm1012, %v1088, %v1090
    %v1097 = vsel %vm1012, %v1092, %v1094
    %v1098 = vsel %vm1012, %v1094, %v1090
    %v1105 = vadd.f32 %v967, %v1086
    %v1106 = vadd.f32 %v968, %v1095
    %v1107 = vadd.f32 %v969, %v1096
    %v1108 = vadd.f32 %v970, %v1092
    %v1109 = vadd.f32 %v971, %v1097
    %v1110 = vadd.f32 %v972, %v1098
    %1111 = vrot.lane.b32.xlu0 %v386, 15
    %v1112 = vpop.permute.xlu0 %1111
    %1113 = vrot.lane.b32.xlu0 %v387, 15
    %v1114 = vpop.permute.xlu0 %1113
    %vm1115 = vcmask 121856
    %v1116 = vsel %vm1115, %v1112, %v1114
    %v1120 = vmul.f32 %v351, %v1112
    %v1121 = vmul.f32 %v352, %v1116
    %v1122 = vmul.f32 %v1114, 0.0
    %v1123 = vmul.f32 %v353, %v1112
    %v1124 = vmul.f32 %v354, %v1116
    %1126 = vset.pattern.permute.xlu0 0
    %1127 = vperm.xlu0 %1126, %v400
    %v1128 = vpop.permute.xlu0 %1127
    %v1130 = vmul.f32 %v1128, %v1120
    %v1131 = vmul.f32 %v1128, %v1121
    %v1132 = vmul.f32 %v1128, %v1122
    %v1133 = vmul.f32 %v1128, %v1123
    %v1134 = vmul.f32 %v1128, %v1124
    %1140 = vrot.lane.b32.xlu0 %v1130, 96
    %v1141 = vpop.permute.xlu0 %1140
    %1142 = vrot.lane.b32.xlu0 %v1131, 96
    %v1143 = vpop.permute.xlu0 %1142
    %1144 = vrot.lane.b32.xlu0 %v1132, 96
    %v1145 = vpop.permute.xlu0 %1144
    %1146 = vrot.lane.b32.xlu0 %v1133, 96
    %v1147 = vpop.permute.xlu0 %1146
    %1148 = vrot.lane.b32.xlu0 %v1134, 96
    %v1149 = vpop.permute.xlu0 %1148
    %vm1150 = vcmask 785408
    %v1151 = vsel %vm1150, %v1141, %v1143
    %v1152 = vsel %vm1150, %v1143, %v1145
    %v1153 = vsel %vm1150, %v1147, %v1149
    %v1154 = vsel %vm1150, %v1149, %v1145
    %v1161 = vadd.f32 %v1023, %v1141
    %v1162 = vadd.f32 %v1024, %v1151
    %v1163 = vadd.f32 %v1025, %v1152
    %v1164 = vadd.f32 %v1026, %v1147
    %v1165 = vadd.f32 %v1027, %v1153
    %v1166 = vadd.f32 %v1028, %v1154
    %1168 = vset.pattern.permute.xlu0 0
    %1169 = vperm.xlu0 %1168, %v409
    %v1170 = vpop.permute.xlu0 %1169
    %v1172 = vmul.f32 %v1170, %v1120
    %v1173 = vmul.f32 %v1170, %v1121
    %v1174 = vmul.f32 %v1170, %v1122
    %v1175 = vmul.f32 %v1170, %v1123
    %v1176 = vmul.f32 %v1170, %v1124
    %1182 = vrot.lane.b32.xlu0 %v1172, 96
    %v1183 = vpop.permute.xlu0 %1182
    %1184 = vrot.lane.b32.xlu0 %v1173, 96
    %v1185 = vpop.permute.xlu0 %1184
    %1186 = vrot.lane.b32.xlu0 %v1174, 96
    %v1187 = vpop.permute.xlu0 %1186
    %1188 = vrot.lane.b32.xlu0 %v1175, 96
    %v1189 = vpop.permute.xlu0 %1188
    %1190 = vrot.lane.b32.xlu0 %v1176, 96
    %v1191 = vpop.permute.xlu0 %1190
    %v1192 = vsel %vm1150, %v1183, %v1185
    %v1193 = vsel %vm1150, %v1185, %v1187
    %v1194 = vsel %vm1150, %v1189, %v1191
    %v1195 = vsel %vm1150, %v1191, %v1187
    %v1202 = vadd.f32 %v1064, %v1183
    %v1203 = vadd.f32 %v1065, %v1192
    %v1204 = vadd.f32 %v1066, %v1193
    %v1205 = vadd.f32 %v1067, %v1189
    %v1206 = vadd.f32 %v1068, %v1194
    %v1207 = vadd.f32 %v1069, %v1195
    %1209 = vset.pattern.permute.xlu0 0
    %1210 = vperm.xlu0 %1209, %v418
    %v1211 = vpop.permute.xlu0 %1210
    %v1213 = vmul.f32 %v1211, %v1120
    %v1214 = vmul.f32 %v1211, %v1121
    %v1215 = vmul.f32 %v1211, %v1122
    %v1216 = vmul.f32 %v1211, %v1123
    %v1217 = vmul.f32 %v1211, %v1124
    %1223 = vrot.lane.b32.xlu0 %v1213, 96
    %v1224 = vpop.permute.xlu0 %1223
    %1225 = vrot.lane.b32.xlu0 %v1214, 96
    %v1226 = vpop.permute.xlu0 %1225
    %1227 = vrot.lane.b32.xlu0 %v1215, 96
    %v1228 = vpop.permute.xlu0 %1227
    %1229 = vrot.lane.b32.xlu0 %v1216, 96
    %v1230 = vpop.permute.xlu0 %1229
    %1231 = vrot.lane.b32.xlu0 %v1217, 96
    %v1232 = vpop.permute.xlu0 %1231
    %v1233 = vsel %vm1150, %v1224, %v1226
    %v1234 = vsel %vm1150, %v1226, %v1228
    %v1235 = vsel %vm1150, %v1230, %v1232
    %v1236 = vsel %vm1150, %v1232, %v1228
    %v1243 = vadd.f32 %v1105, %v1224
    %v1244 = vadd.f32 %v1106, %v1233
    %v1245 = vadd.f32 %v1107, %v1234
    %v1246 = vadd.f32 %v1108, %v1230
    %v1247 = vadd.f32 %v1109, %v1235
    %v1248 = vadd.f32 %v1110, %v1236
    %1250 = vset.pattern.permute.xlu0 0
    %1251 = vperm.xlu0 %1250, %v401
    %v1252 = vpop.permute.xlu0 %1251
    %v1254 = vmul.f32 %v1252, %v351
    %v1255 = vmul.f32 %v1252, %v352
    %v1256 = vmul.f32 %v1252, 0.0
    %v1257 = vmul.f32 %v1252, %v353
    %v1258 = vmul.f32 %v1252, %v354
    %1264 = vrot.lane.b32.xlu0 %v1254, 95
    %v1265 = vpop.permute.xlu0 %1264
    %1266 = vrot.lane.b32.xlu0 %v1255, 95
    %v1267 = vpop.permute.xlu0 %1266
    %1268 = vrot.lane.b32.xlu0 %v1256, 95
    %v1269 = vpop.permute.xlu0 %1268
    %1270 = vrot.lane.b32.xlu0 %v1257, 95
    %v1271 = vpop.permute.xlu0 %1270
    %1272 = vrot.lane.b32.xlu0 %v1258, 95
    %v1273 = vpop.permute.xlu0 %1272
    %vm1274 = vcmask 777216
    %v1275 = vsel %vm1274, %v1265, %v1267
    %v1276 = vsel %vm1274, %v1267, %v1269
    %v1277 = vsel %vm1274, %v1271, %v1273
    %v1278 = vsel %vm1274, %v1273, %v1269
    %v1285 = vadd.f32 %v1161, %v1265
    %v1286 = vadd.f32 %v1162, %v1275
    %v1287 = vadd.f32 %v1163, %v1276
    %v1288 = vadd.f32 %v1164, %v1271
    %v1289 = vadd.f32 %v1165, %v1277
    %v1290 = vadd.f32 %v1166, %v1278
    %1292 = vset.pattern.permute.xlu0 0
    %1293 = vperm.xlu0 %1292, %v410
    %v1294 = vpop.permute.xlu0 %1293
    %v1296 = vmul.f32 %v1294, %v351
    %v1297 = vmul.f32 %v1294, %v352
    %v1298 = vmul.f32 %v1294, 0.0
    %v1299 = vmul.f32 %v1294, %v353
    %v1300 = vmul.f32 %v1294, %v354
    %1306 = vrot.lane.b32.xlu0 %v1296, 95
    %v1307 = vpop.permute.xlu0 %1306
    %1308 = vrot.lane.b32.xlu0 %v1297, 95
    %v1309 = vpop.permute.xlu0 %1308
    %1310 = vrot.lane.b32.xlu0 %v1298, 95
    %v1311 = vpop.permute.xlu0 %1310
    %1312 = vrot.lane.b32.xlu0 %v1299, 95
    %v1313 = vpop.permute.xlu0 %1312
    %1314 = vrot.lane.b32.xlu0 %v1300, 95
    %v1315 = vpop.permute.xlu0 %1314
    %v1316 = vsel %vm1274, %v1307, %v1309
    %v1317 = vsel %vm1274, %v1309, %v1311
    %v1318 = vsel %vm1274, %v1313, %v1315
    %v1319 = vsel %vm1274, %v1315, %v1311
    %v1326 = vadd.f32 %v1202, %v1307
    %v1327 = vadd.f32 %v1203, %v1316
    %v1328 = vadd.f32 %v1204, %v1317
    %v1329 = vadd.f32 %v1205, %v1313
    %v1330 = vadd.f32 %v1206, %v1318
    %v1331 = vadd.f32 %v1207, %v1319
    %1333 = vset.pattern.permute.xlu0 0
    %1334 = vperm.xlu0 %1333, %v419
    %v1335 = vpop.permute.xlu0 %1334
    %v1337 = vmul.f32 %v1335, %v351
    %v1338 = vmul.f32 %v1335, %v352
    %v1339 = vmul.f32 %v1335, 0.0
    %v1340 = vmul.f32 %v1335, %v353
    %v1341 = vmul.f32 %v1335, %v354
    %1347 = vrot.lane.b32.xlu0 %v1337, 95
    %v1348 = vpop.permute.xlu0 %1347
    %1349 = vrot.lane.b32.xlu0 %v1338, 95
    %v1350 = vpop.permute.xlu0 %1349
    %1351 = vrot.lane.b32.xlu0 %v1339, 95
    %v1352 = vpop.permute.xlu0 %1351
    %1353 = vrot.lane.b32.xlu0 %v1340, 95
    %v1354 = vpop.permute.xlu0 %1353
    %1355 = vrot.lane.b32.xlu0 %v1341, 95
    %v1356 = vpop.permute.xlu0 %1355
    %v1357 = vsel %vm1274, %v1348, %v1350
    %v1358 = vsel %vm1274, %v1350, %v1352
    %v1359 = vsel %vm1274, %v1354, %v1356
    %v1360 = vsel %vm1274, %v1356, %v1352
    %v1367 = vadd.f32 %v1243, %v1348
    %v1368 = vadd.f32 %v1244, %v1357
    %v1369 = vadd.f32 %v1245, %v1358
    %v1370 = vadd.f32 %v1246, %v1354
    %v1371 = vadd.f32 %v1247, %v1359
    %v1372 = vadd.f32 %v1248, %v1360
    %1373 = vrot.lane.b32.xlu0 %v392, 17
    %v1374 = vpop.permute.xlu0 %1373
    %1375 = vrot.lane.b32.xlu0 %v393, 17
    %v1376 = vpop.permute.xlu0 %1375
    %vm1377 = vcmask 138240
    %v1378 = vsel %vm1377, %v1374, %v1376
    %v1382 = vmul.f32 %v351, %v1374
    %v1383 = vmul.f32 %v352, %v1378
    %v1384 = vmul.f32 %v1376, 0.0
    %v1385 = vmul.f32 %v353, %v1374
    %v1386 = vmul.f32 %v354, %v1378
    %1388 = vset.pattern.permute.xlu0 0
    %1389 = vperm.xlu0 %1388, %v402
    %v1390 = vpop.permute.xlu0 %1389
    %v1392 = vmul.f32 %v1390, %v1382
    %v1393 = vmul.f32 %v1390, %v1383
    %v1394 = vmul.f32 %v1390, %v1384
    %v1395 = vmul.f32 %v1390, %v1385
    %v1396 = vmul.f32 %v1390, %v1386
    %1402 = vrot.lane.b32.xlu0 %v1392, 94
    %v1403 = vpop.permute.xlu0 %1402
    %1404 = vrot.lane.b32.xlu0 %v1393, 94
    %v1405 = vpop.permute.xlu0 %1404
    %1406 = vrot.lane.b32.xlu0 %v1394, 94
    %v1407 = vpop.permute.xlu0 %1406
    %1408 = vrot.lane.b32.xlu0 %v1395, 94
    %v1409 = vpop.permute.xlu0 %1408
    %1410 = vrot.lane.b32.xlu0 %v1396, 94
    %v1411 = vpop.permute.xlu0 %1410
    %vm1412 = vcmask 769024
    %v1413 = vsel %vm1412, %v1403, %v1405
    %v1414 = vsel %vm1412, %v1405, %v1407
    %v1415 = vsel %vm1412, %v1409, %v1411
    %v1416 = vsel %vm1412, %v1411, %v1407
    %v1423 = vadd.f32 %v1285, %v1403
    %v1424 = vadd.f32 %v1286, %v1413
    %v1425 = vadd.f32 %v1287, %v1414
    %v1426 = vadd.f32 %v1288, %v1409
    %v1427 = vadd.f32 %v1289, %v1415
    %v1428 = vadd.f32 %v1290, %v1416
    %1430 = vset.pattern.permute.xlu0 0
    %1431 = vperm.xlu0 %1430, %v411
    %v1432 = vpop.permute.xlu0 %1431
    %v1434 = vmul.f32 %v1432, %v1382
    %v1435 = vmul.f32 %v1432, %v1383
    %v1436 = vmul.f32 %v1432, %v1384
    %v1437 = vmul.f32 %v1432, %v1385
    %v1438 = vmul.f32 %v1432, %v1386
    %1444 = vrot.lane.b32.xlu0 %v1434, 94
    %v1445 = vpop.permute.xlu0 %1444
    %1446 = vrot.lane.b32.xlu0 %v1435, 94
    %v1447 = vpop.permute.xlu0 %1446
    %1448 = vrot.lane.b32.xlu0 %v1436, 94
    %v1449 = vpop.permute.xlu0 %1448
    %1450 = vrot.lane.b32.xlu0 %v1437, 94
    %v1451 = vpop.permute.xlu0 %1450
    %1452 = vrot.lane.b32.xlu0 %v1438, 94
    %v1453 = vpop.permute.xlu0 %1452
    %v1454 = vsel %vm1412, %v1445, %v1447
    %v1455 = vsel %vm1412, %v1447, %v1449
    %v1456 = vsel %vm1412, %v1451, %v1453
    %v1457 = vsel %vm1412, %v1453, %v1449
    %v1464 = vadd.f32 %v1326, %v1445
    %v1465 = vadd.f32 %v1327, %v1454
    %v1466 = vadd.f32 %v1328, %v1455
    %v1467 = vadd.f32 %v1329, %v1451
    %v1468 = vadd.f32 %v1330, %v1456
    %v1469 = vadd.f32 %v1331, %v1457
    %1471 = vset.pattern.permute.xlu0 0
    %1472 = vperm.xlu0 %1471, %v420
    %v1473 = vpop.permute.xlu0 %1472
    %v1475 = vmul.f32 %v1473, %v1382
    %v1476 = vmul.f32 %v1473, %v1383
    %v1477 = vmul.f32 %v1473, %v1384
    %v1478 = vmul.f32 %v1473, %v1385
    %v1479 = vmul.f32 %v1473, %v1386
    %1485 = vrot.lane.b32.xlu0 %v1475, 94
    %v1486 = vpop.permute.xlu0 %1485
    %1487 = vrot.lane.b32.xlu0 %v1476, 94
    %v1488 = vpop.permute.xlu0 %1487
    %1489 = vrot.lane.b32.xlu0 %v1477, 94
    %v1490 = vpop.permute.xlu0 %1489
    %1491 = vrot.lane.b32.xlu0 %v1478, 94
    %v1492 = vpop.permute.xlu0 %1491
    %1493 = vrot.lane.b32.xlu0 %v1479, 94
    %v1494 = vpop.permute.xlu0 %1493
    %v1495 = vsel %vm1412, %v1486, %v1488
    %v1496 = vsel %vm1412, %v1488, %v1490
    %v1497 = vsel %vm1412, %v1492, %v1494
    %v1498 = vsel %vm1412, %v1494, %v1490
    %v1505 = vadd.f32 %v1367, %v1486
    %v1506 = vadd.f32 %v1368, %v1495
    %v1507 = vadd.f32 %v1369, %v1496
    %v1508 = vadd.f32 %v1370, %v1492
    %v1509 = vadd.f32 %v1371, %v1497
    %v1510 = vadd.f32 %v1372, %v1498
    %v1511 = vld [vmem:[%s4] sm:$0xff]
    %1513 = vset.pattern.permute.xlu0 0
    %1514 = vperm.xlu0 %1513, %v1511
    %v1515 = vpop.permute.xlu0 %1514
    %v1517 = vadd.f32 %v1423, %v1515
    %v1518 = vadd.f32 %v1424, %v1515
    %v1519 = vadd.f32 %v1425, %v1515
    %v1520 = vadd.f32 %v1426, %v1515
    %v1521 = vadd.f32 %v1427, %v1515
    %v1522 = vadd.f32 %v1428, %v1515
    %vm1523 = vcmp.ge.f32.partialorder %v1517, 0.0
    %vm1524 = vcmp.ge.f32.partialorder %v1518, 0.0
    %vm1525 = vcmp.ge.f32.partialorder %v1519, 0.0
    %vm1526 = vcmp.ge.f32.partialorder %v1520, 0.0
    %vm1527 = vcmp.ge.f32.partialorder %v1521, 0.0
    %vm1528 = vcmp.ge.f32.partialorder %v1522, 0.0
    %v1529 = vmul.f32 %v1517, 0.2
    %v1530 = vmul.f32 %v1518, 0.2
    %v1531 = vmul.f32 %v1519, 0.2
    %v1532 = vmul.f32 %v1520, 0.2
    %v1533 = vmul.f32 %v1521, 0.2
    %v1534 = vmul.f32 %v1522, 0.2
    %v1535 = vsel %vm1523, %v1517, %v1529
    %v1536 = vsel %vm1524, %v1518, %v1530
    %v1537 = vsel %vm1525, %v1519, %v1531
    %v1538 = vsel %vm1526, %v1520, %v1532
    %v1539 = vsel %vm1527, %v1521, %v1533
    %v1540 = vsel %vm1528, %v1522, %v1534
    %v1541 = vld [vmem:[%s6] sm:$0xff]
    %1543 = vset.pattern.permute.xlu0 0
    %1544 = vperm.xlu0 %1543, %v1541
    %v1545 = vpop.permute.xlu0 %1544
    %v1547 = vadd.f32 %v1464, %v1545
    %v1548 = vadd.f32 %v1465, %v1545
    %v1549 = vadd.f32 %v1466, %v1545
    %v1550 = vadd.f32 %v1467, %v1545
    %v1551 = vadd.f32 %v1468, %v1545
    %v1552 = vadd.f32 %v1469, %v1545
    %vm1553 = vcmp.ge.f32.partialorder %v1547, 0.0
    %vm1554 = vcmp.ge.f32.partialorder %v1548, 0.0
    %vm1555 = vcmp.ge.f32.partialorder %v1549, 0.0
    %vm1556 = vcmp.ge.f32.partialorder %v1550, 0.0
    %vm1557 = vcmp.ge.f32.partialorder %v1551, 0.0
    %vm1558 = vcmp.ge.f32.partialorder %v1552, 0.0
    %v1559 = vmul.f32 %v1547, 0.2
    %v1560 = vmul.f32 %v1548, 0.2
    %v1561 = vmul.f32 %v1549, 0.2
    %v1562 = vmul.f32 %v1550, 0.2
    %v1563 = vmul.f32 %v1551, 0.2
    %v1564 = vmul.f32 %v1552, 0.2
    %v1565 = vsel %vm1553, %v1547, %v1559
    %v1566 = vsel %vm1554, %v1548, %v1560
    %v1567 = vsel %vm1555, %v1549, %v1561
    %v1568 = vsel %vm1556, %v1550, %v1562
    %v1569 = vsel %vm1557, %v1551, %v1563
    %v1570 = vsel %vm1558, %v1552, %v1564
    %v1571 = vld [vmem:[%s8] sm:$0xff]
    %1573 = vset.pattern.permute.xlu0 0
    %1574 = vperm.xlu0 %1573, %v1571
    %v1575 = vpop.permute.xlu0 %1574
    %v1577 = vadd.f32 %v1505, %v1575
    %v1578 = vadd.f32 %v1506, %v1575
    %v1579 = vadd.f32 %v1507, %v1575
    %v1580 = vadd.f32 %v1508, %v1575
    %v1581 = vadd.f32 %v1509, %v1575
    %v1582 = vadd.f32 %v1510, %v1575
    %v1583 = vld [vmem:[%s9] sm:$0xff]
    %1585 = vset.pattern.permute.xlu0 0
    %1586 = vperm.xlu0 %1585, %v1583
    %v1587 = vpop.permute.xlu0 %1586
    %v1589 = vmul.f32 %v1577, %v1587
    %v1590 = vmul.f32 %v1578, %v1587
    %v1591 = vmul.f32 %v1579, %v1587
    %v1592 = vmul.f32 %v1580, %v1587
    %v1593 = vmul.f32 %v1581, %v1587
    %v1594 = vmul.f32 %v1582, %v1587
    %vm1595 = vcmask 1048440
    %v1596 = vsel %vm1595, %v1589, 0.0
    %v1597 = vrot.slane %v1596, 4
    %v1598 = vadd.f32 %v1596, %v1597
    %v1599 = vrot.slane %v1598, 2
    %v1600 = vadd.f32 %v1598, %v1599
    %v1601 = vrot.slane %v1600, 1
    %v1602 = vadd.f32 %v1600, %v1601
    %v1603 = vrot.slane %v1590, 4
    %v1604 = vadd.f32 %v1590, %v1603
    %v1605 = vrot.slane %v1604, 2
    %v1606 = vadd.f32 %v1604, %v1605
    %v1607 = vrot.slane %v1606, 1
    %v1608 = vadd.f32 %v1606, %v1607
    %v1609 = vsel %vm427, %v1591, 0.0
    %v1610 = vrot.slane %v1609, 4
    %v1611 = vadd.f32 %v1609, %v1610
    %v1612 = vrot.slane %v1611, 2
    %v1613 = vadd.f32 %v1611, %v1612
    %v1614 = vrot.slane %v1613, 1
    %v1615 = vadd.f32 %v1613, %v1614
    %v1616 = vsel %vm1595, %v1592, 0.0
    %v1617 = vrot.slane %v1616, 4
    %v1618 = vadd.f32 %v1616, %v1617
    %v1619 = vrot.slane %v1618, 2
    %v1620 = vadd.f32 %v1618, %v1619
    %v1621 = vrot.slane %v1620, 1
    %v1622 = vadd.f32 %v1620, %v1621
    %v1623 = vrot.slane %v1593, 4
    %v1624 = vadd.f32 %v1593, %v1623
    %v1625 = vrot.slane %v1624, 2
    %v1626 = vadd.f32 %v1624, %v1625
    %v1627 = vrot.slane %v1626, 1
    %v1628 = vadd.f32 %v1626, %v1627
    %v1629 = vsel %vm427, %v1594, 0.0
    %v1630 = vrot.slane %v1629, 4
    %v1631 = vadd.f32 %v1629, %v1630
    %v1632 = vrot.slane %v1631, 2
    %v1633 = vadd.f32 %v1631, %v1632
    %v1634 = vrot.slane %v1633, 1
    %v1635 = vadd.f32 %v1633, %v1634
    %v1636 = vld [vmem:[#allocation2] sm:$0x1]
    %1638 = vset.pattern.permute.xlu0 0
    %1639 = vperm.xlu0 %1638, %v1636
    %v1640 = vpop.permute.xlu0 %1639
    %v1642 = vlaneseq
    %v1643 = vshrl.u32 %v1642, 7
    %v1644 = vsub.s32 0, %v1643
    %v1645 = vrot.slane %v1640, %v1644
    %v1646 = vadd.f32 %v1602, %v1645
    %v1647 = vadd.f32 %v1608, %v1645
    %v1648 = vadd.f32 %v1615, %v1645
    %v1649 = vadd.f32 %v1622, %v1645
    %v1650 = vadd.f32 %v1628, %v1645
    %v1651 = vadd.f32 %v1635, %v1645
    %vm1652 = vcmp.ge.f32.partialorder %v1646, 0.0
    %vm1653 = vcmp.ge.f32.partialorder %v1647, 0.0
    %vm1654 = vcmp.ge.f32.partialorder %v1648, 0.0
    %vm1655 = vcmp.ge.f32.partialorder %v1649, 0.0
    %vm1656 = vcmp.ge.f32.partialorder %v1650, 0.0
    %vm1657 = vcmp.ge.f32.partialorder %v1651, 0.0
    %v1658 = vmul.f32 %v1646, 0.2
    %v1659 = vmul.f32 %v1647, 0.2
    %v1660 = vmul.f32 %v1648, 0.2
    %v1661 = vmul.f32 %v1649, 0.2
    %v1662 = vmul.f32 %v1650, 0.2
    %v1663 = vmul.f32 %v1651, 0.2
    %v1664 = vsel %vm1652, %v1646, %v1658
    %v1665 = vsel %vm1653, %v1647, %v1659
    %v1666 = vsel %vm1654, %v1648, %v1660
    %v1667 = vsel %vm1655, %v1649, %v1661
    %v1668 = vsel %vm1656, %v1650, %v1662
    %v1669 = vsel %vm1657, %v1651, %v1663
    %v1670 = vsel %vm1595, %v1664, -inf
    %v1671 = vsel %vm427, %v1666, -inf
    %v1672 = vmax.f32 %v1670, %v1671
    %v1673 = vmax.f32 %v1672, %v1665
    %1674 = vmax.xlane.f32.xlu0 %v1673
    %v1675 = vpop.xlane.xlu0 %1674
    %v1676 = vsel %vm1595, %v1667, -inf
    %v1677 = vsel %vm427, %v1669, -inf
    %v1678 = vmax.f32 %v1676, %v1677
    %v1679 = vmax.f32 %v1678, %v1668
    %1680 = vmax.xlane.f32.xlu0 %v1679
    %v1681 = vpop.xlane.xlu0 %1680
    %v1682 = vsub.f32 %v1664, %v1675
    %v1683 = vsub.f32 %v1665, %v1675
    %v1684 = vsub.f32 %v1666, %v1675
    %v1685 = vsub.f32 %v1667, %v1681
    %v1686 = vsub.f32 %v1668, %v1681
    %v1687 = vsub.f32 %v1669, %v1681
    %v1688 = vmul.f32 %v1682, 1.442695
    %v1689 = vpow.pop %v1688
    %v1690 = vmul.f32 %v1683, 1.442695
    %v1691 = vpow.pop %v1690
    %v1692 = vmul.f32 %v1684, 1.442695
    %v1693 = vpow.pop %v1692
    %v1694 = vmul.f32 %v1685, 1.442695
    %v1695 = vpow.pop %v1694
    %v1696 = vmul.f32 %v1686, 1.442695
    %v1697 = vpow.pop %v1696
    %v1698 = vmul.f32 %v1687, 1.442695
    %v1699 = vpow.pop %v1698
    %1706 = vrot.lane.b32.xlu0 %v1689, 17
    %v1707 = vpop.permute.xlu0 %1706
    %1708 = vrot.lane.b32.xlu0 %v1691, 17
    %v1709 = vpop.permute.xlu0 %1708
    %1710 = vrot.lane.b32.xlu0 %v1693, 17
    %v1711 = vpop.permute.xlu0 %1710
    %1712 = vrot.lane.b32.xlu0 %v1695, 17
    %v1713 = vpop.permute.xlu0 %1712
    %1714 = vrot.lane.b32.xlu0 %v1697, 17
    %v1715 = vpop.permute.xlu0 %1714
    %1716 = vrot.lane.b32.xlu0 %v1699, 17
    %v1717 = vpop.permute.xlu0 %1716
    %v1718 = vsel %vm1377, %v1707, %v1709
    %v1719 = vsel %vm1377, %v1709, %v1711
    %v1720 = vsel %vm1377, %v1713, %v1715
    %v1721 = vsel %vm1377, %v1715, %v1717
    %v1726 = vadd.f32 %v1718, %v1719
    %1727 = vadd.xlane.f32.xlu0 %v1726
    %v1728 = vpop.xlane.xlu0 %1727
    %v1729 = vadd.f32 %v1720, %v1721
    %1730 = vadd.xlane.f32.xlu0 %v1729
    %v1731 = vpop.xlane.xlu0 %1730
    %v1732 = vrcp.pop %v1728
    %v1733 = vrcp.pop %v1731
    %v1734 = vmul.f32 %v1689, %v1732
    %v1735 = vmul.f32 %v1691, %v1732
    %v1736 = vmul.f32 %v1693, %v1732
    %v1737 = vmul.f32 %v1695, %v1733
    %v1738 = vmul.f32 %v1697, %v1733
    %v1739 = vmul.f32 %v1699, %v1733
    %v1740 = vmul.f32 %v1734, %v1535
    %v1741 = vmul.f32 %v1735, %v1536
    %v1742 = vmul.f32 %v1736, %v1537
    %v1743 = vmul.f32 %v1737, %v1538
    %v1744 = vmul.f32 %v1738, %v1539
    %v1745 = vmul.f32 %v1739, %v1540
    %1752 = vrot.lane.b32.xlu0 %v1740, 17
    %v1753 = vpop.permute.xlu0 %1752
    %1754 = vrot.lane.b32.xlu0 %v1741, 17
    %v1755 = vpop.permute.xlu0 %1754
    %1756 = vrot.lane.b32.xlu0 %v1742, 17
    %v1757 = vpop.permute.xlu0 %1756
    %1758 = vrot.lane.b32.xlu0 %v1743, 17
    %v1759 = vpop.permute.xlu0 %1758
    %1760 = vrot.lane.b32.xlu0 %v1744, 17
    %v1761 = vpop.permute.xlu0 %1760
    %1762 = vrot.lane.b32.xlu0 %v1745, 17
    %v1763 = vpop.permute.xlu0 %1762
    %v1764 = vsel %vm1377, %v1753, %v1755
    %v1765 = vsel %vm1377, %v1755, %v1757
    %v1766 = vsel %vm1377, %v1759, %v1761
    %v1767 = vsel %vm1377, %v1761, %v1763
    %v1772 = vadd.f32 %v1764, %v1765
    %1773 = vadd.xlane.f32.xlu0 %v1772
    %v1774 = vpop.xlane.xlu0 %1773
    %v1775 = vadd.f32 %v1766, %v1767
    %1776 = vadd.xlane.f32.xlu0 %v1775
    %v1777 = vpop.xlane.xlu0 %1776
    %v1778 = vmul.f32 %v1774, %v1565
    %v1779 = vmul.f32 %v1774, %v1566
    %v1780 = vmul.f32 %v1774, %v1567
    %v1781 = vmul.f32 %v1777, %v1568
    %v1782 = vmul.f32 %v1777, %v1569
    %v1783 = vmul.f32 %v1777, %v1570
    %v1784 = vld [vmem:[%s11] sm:$0xff]
    %v1785 = vld [vmem:[%s12] sm:$0xff]
    %1787 = vset.pattern.permute.xlu0 0
    %1788 = vperm.xlu0 %1787, %v1784
    %v1789 = vpop.permute.xlu0 %1788
    %v1791 = vlaneseq
    %v1792 = vshrl.u32 %v1791, 7
    %v1793 = vsub.s32 0, %v1792
    %v1794 = vrot.slane %v1778, %v1793
    %v1795 = vlaneseq
    %v1796 = vshrl.u32 %v1795, 7
    %v1797 = vsub.s32 0, %v1796
    %v1798 = vrot.slane %v1779, %v1797
    %v1799 = vlaneseq
    %v1800 = vshrl.u32 %v1799, 7
    %v1801 = vsub.s32 0, %v1800
    %v1802 = vrot.slane %v1780, %v1801
    %v1803 = vlaneseq
    %v1804 = vshrl.u32 %v1803, 7
    %v1805 = vsub.s32 0, %v1804
    %v1806 = vrot.slane %v1781, %v1805
    %v1807 = vlaneseq
    %v1808 = vshrl.u32 %v1807, 7
    %v1809 = vsub.s32 0, %v1808
    %v1810 = vrot.slane %v1782, %v1809
    %v1811 = vlaneseq
    %v1812 = vshrl.u32 %v1811, 7
    %v1813 = vsub.s32 0, %v1812
    %v1814 = vrot.slane %v1783, %v1813
    %v1815 = vmul.f32 %v1789, %v1794
    %v1816 = vmul.f32 %v1789, %v1798
    %v1817 = vmul.f32 %v1789, %v1802
    %v1818 = vmul.f32 %v1789, %v1806
    %v1819 = vmul.f32 %v1789, %v1810
    %v1820 = vmul.f32 %v1789, %v1814
    %1821 = vset.pattern.permute.xlu0 1
    %1822 = vperm.xlu0 %1821, %v1784
    %v1823 = vpop.permute.xlu0 %1822
    %v1825 = vlaneseq
    %v1826 = vshrl.u32 %v1825, 7
    %v1827 = vsub.s32 1, %v1826
    %v1828 = vrot.slane %v1778, %v1827
    %v1829 = vlaneseq
    %v1830 = vshrl.u32 %v1829, 7
    %v1831 = vsub.s32 1, %v1830
    %v1832 = vrot.slane %v1779, %v1831
    %v1833 = vlaneseq
    %v1834 = vshrl.u32 %v1833, 7
    %v1835 = vsub.s32 1, %v1834
    %v1836 = vrot.slane %v1780, %v1835
    %v1837 = vlaneseq
    %v1838 = vshrl.u32 %v1837, 7
    %v1839 = vsub.s32 1, %v1838
    %v1840 = vrot.slane %v1781, %v1839
    %v1841 = vlaneseq
    %v1842 = vshrl.u32 %v1841, 7
    %v1843 = vsub.s32 1, %v1842
    %v1844 = vrot.slane %v1782, %v1843
    %v1845 = vlaneseq
    %v1846 = vshrl.u32 %v1845, 7
    %v1847 = vsub.s32 1, %v1846
    %v1848 = vrot.slane %v1783, %v1847
    %v1849 = vmul.f32 %v1823, %v1828
    %v1850 = vmul.f32 %v1823, %v1832
    %v1851 = vmul.f32 %v1823, %v1836
    %v1852 = vmul.f32 %v1823, %v1840
    %v1853 = vmul.f32 %v1823, %v1844
    %v1854 = vmul.f32 %v1823, %v1848
    %v1855 = vadd.f32 %v1815, %v1849
    %v1856 = vadd.f32 %v1816, %v1850
    %v1857 = vadd.f32 %v1817, %v1851
    %v1858 = vadd.f32 %v1818, %v1852
    %v1859 = vadd.f32 %v1819, %v1853
    %v1860 = vadd.f32 %v1820, %v1854
    %1861 = vset.pattern.permute.xlu0 2
    %1862 = vperm.xlu0 %1861, %v1784
    %v1863 = vpop.permute.xlu0 %1862
    %v1865 = vlaneseq
    %v1866 = vshrl.u32 %v1865, 7
    %v1867 = vsub.s32 2, %v1866
    %v1868 = vrot.slane %v1778, %v1867
    %v1869 = vlaneseq
    %v1870 = vshrl.u32 %v1869, 7
    %v1871 = vsub.s32 2, %v1870
    %v1872 = vrot.slane %v1779, %v1871
    %v1873 = vlaneseq
    %v1874 = vshrl.u32 %v1873, 7
    %v1875 = vsub.s32 2, %v1874
    %v1876 = vrot.slane %v1780, %v1875
    %v1877 = vlaneseq
    %v1878 = vshrl.u32 %v1877, 7
    %v1879 = vsub.s32 2, %v1878
    %v1880 = vrot.slane %v1781, %v1879
    %v1881 = vlaneseq
    %v1882 = vshrl.u32 %v1881, 7
    %v1883 = vsub.s32 2, %v1882
    %v1884 = vrot.slane %v1782, %v1883
    %v1885 = vlaneseq
    %v1886 = vshrl.u32 %v1885, 7
    %v1887 = vsub.s32 2, %v1886
    %v1888 = vrot.slane %v1783, %v1887
    %v1889 = vmul.f32 %v1863, %v1868
    %v1890 = vmul.f32 %v1863, %v1872
    %v1891 = vmul.f32 %v1863, %v1876
    %v1892 = vmul.f32 %v1863, %v1880
    %v1893 = vmul.f32 %v1863, %v1884
    %v1894 = vmul.f32 %v1863, %v1888
    %v1895 = vadd.f32 %v1855, %v1889
    %v1896 = vadd.f32 %v1856, %v1890
    %v1897 = vadd.f32 %v1857, %v1891
    %v1898 = vadd.f32 %v1858, %v1892
    %v1899 = vadd.f32 %v1859, %v1893
    %v1900 = vadd.f32 %v1860, %v1894
    %1901 = vset.pattern.permute.xlu0 3
    %1902 = vperm.xlu0 %1901, %v1784
    %v1903 = vpop.permute.xlu0 %1902
    %v1905 = vlaneseq
    %v1906 = vshrl.u32 %v1905, 7
    %v1907 = vsub.s32 3, %v1906
    %v1908 = vrot.slane %v1778, %v1907
    %v1909 = vlaneseq
    %v1910 = vshrl.u32 %v1909, 7
    %v1911 = vsub.s32 3, %v1910
    %v1912 = vrot.slane %v1779, %v1911
    %v1913 = vlaneseq
    %v1914 = vshrl.u32 %v1913, 7
    %v1915 = vsub.s32 3, %v1914
    %v1916 = vrot.slane %v1780, %v1915
    %v1917 = vlaneseq
    %v1918 = vshrl.u32 %v1917, 7
    %v1919 = vsub.s32 3, %v1918
    %v1920 = vrot.slane %v1781, %v1919
    %v1921 = vlaneseq
    %v1922 = vshrl.u32 %v1921, 7
    %v1923 = vsub.s32 3, %v1922
    %v1924 = vrot.slane %v1782, %v1923
    %v1925 = vlaneseq
    %v1926 = vshrl.u32 %v1925, 7
    %v1927 = vsub.s32 3, %v1926
    %v1928 = vrot.slane %v1783, %v1927
    %v1929 = vmul.f32 %v1903, %v1908
    %v1930 = vmul.f32 %v1903, %v1912
    %v1931 = vmul.f32 %v1903, %v1916
    %v1932 = vmul.f32 %v1903, %v1920
    %v1933 = vmul.f32 %v1903, %v1924
    %v1934 = vmul.f32 %v1903, %v1928
    %v1935 = vadd.f32 %v1895, %v1929
    %v1936 = vadd.f32 %v1896, %v1930
    %v1937 = vadd.f32 %v1897, %v1931
    %v1938 = vadd.f32 %v1898, %v1932
    %v1939 = vadd.f32 %v1899, %v1933
    %v1940 = vadd.f32 %v1900, %v1934
    %1941 = vset.pattern.permute.xlu0 4
    %1942 = vperm.xlu0 %1941, %v1784
    %v1943 = vpop.permute.xlu0 %1942
    %v1945 = vlaneseq
    %v1946 = vshrl.u32 %v1945, 7
    %v1947 = vsub.s32 4, %v1946
    %v1948 = vrot.slane %v1778, %v1947
    %v1949 = vlaneseq
    %v1950 = vshrl.u32 %v1949, 7
    %v1951 = vsub.s32 4, %v1950
    %v1952 = vrot.slane %v1779, %v1951
    %v1953 = vlaneseq
    %v1954 = vshrl.u32 %v1953, 7
    %v1955 = vsub.s32 4, %v1954
    %v1956 = vrot.slane %v1780, %v1955
    %v1957 = vlaneseq
    %v1958 = vshrl.u32 %v1957, 7
    %v1959 = vsub.s32 4, %v1958
    %v1960 = vrot.slane %v1781, %v1959
    %v1961 = vlaneseq
    %v1962 = vshrl.u32 %v1961, 7
    %v1963 = vsub.s32 4, %v1962
    %v1964 = vrot.slane %v1782, %v1963
    %v1965 = vlaneseq
    %v1966 = vshrl.u32 %v1965, 7
    %v1967 = vsub.s32 4, %v1966
    %v1968 = vrot.slane %v1783, %v1967
    %v1969 = vmul.f32 %v1943, %v1948
    %v1970 = vmul.f32 %v1943, %v1952
    %v1971 = vmul.f32 %v1943, %v1956
    %v1972 = vmul.f32 %v1943, %v1960
    %v1973 = vmul.f32 %v1943, %v1964
    %v1974 = vmul.f32 %v1943, %v1968
    %v1975 = vadd.f32 %v1935, %v1969
    %v1976 = vadd.f32 %v1936, %v1970
    %v1977 = vadd.f32 %v1937, %v1971
    %v1978 = vadd.f32 %v1938, %v1972
    %v1979 = vadd.f32 %v1939, %v1973
    %v1980 = vadd.f32 %v1940, %v1974
    %1981 = vset.pattern.permute.xlu0 5
    %1982 = vperm.xlu0 %1981, %v1784
    %v1983 = vpop.permute.xlu0 %1982
    %v1985 = vlaneseq
    %v1986 = vshrl.u32 %v1985, 7
    %v1987 = vsub.s32 5, %v1986
    %v1988 = vrot.slane %v1778, %v1987
    %v1989 = vlaneseq
    %v1990 = vshrl.u32 %v1989, 7
    %v1991 = vsub.s32 5, %v1990
    %v1992 = vrot.slane %v1779, %v1991
    %v1993 = vlaneseq
    %v1994 = vshrl.u32 %v1993, 7
    %v1995 = vsub.s32 5, %v1994
    %v1996 = vrot.slane %v1780, %v1995
    %v1997 = vlaneseq
    %v1998 = vshrl.u32 %v1997, 7
    %v1999 = vsub.s32 5, %v1998
    %v2000 = vrot.slane %v1781, %v1999
    %v2001 = vlaneseq
    %v2002 = vshrl.u32 %v2001, 7
    %v2003 = vsub.s32 5, %v2002
    %v2004 = vrot.slane %v1782, %v2003
    %v2005 = vlaneseq
    %v2006 = vshrl.u32 %v2005, 7
    %v2007 = vsub.s32 5, %v2006
    %v2008 = vrot.slane %v1783, %v2007
    %v2009 = vmul.f32 %v1983, %v1988
    %v2010 = vmul.f32 %v1983, %v1992
    %v2011 = vmul.f32 %v1983, %v1996
    %v2012 = vmul.f32 %v1983, %v2000
    %v2013 = vmul.f32 %v1983, %v2004
    %v2014 = vmul.f32 %v1983, %v2008
    %v2015 = vadd.f32 %v1975, %v2009
    %v2016 = vadd.f32 %v1976, %v2010
    %v2017 = vadd.f32 %v1977, %v2011
    %v2018 = vadd.f32 %v1978, %v2012
    %v2019 = vadd.f32 %v1979, %v2013
    %v2020 = vadd.f32 %v1980, %v2014
    %2021 = vset.pattern.permute.xlu0 6
    %2022 = vperm.xlu0 %2021, %v1784
    %v2023 = vpop.permute.xlu0 %2022
    %v2025 = vlaneseq
    %v2026 = vshrl.u32 %v2025, 7
    %v2027 = vsub.s32 6, %v2026
    %v2028 = vrot.slane %v1778, %v2027
    %v2029 = vlaneseq
    %v2030 = vshrl.u32 %v2029, 7
    %v2031 = vsub.s32 6, %v2030
    %v2032 = vrot.slane %v1779, %v2031
    %v2033 = vlaneseq
    %v2034 = vshrl.u32 %v2033, 7
    %v2035 = vsub.s32 6, %v2034
    %v2036 = vrot.slane %v1780, %v2035
    %v2037 = vlaneseq
    %v2038 = vshrl.u32 %v2037, 7
    %v2039 = vsub.s32 6, %v2038
    %v2040 = vrot.slane %v1781, %v2039
    %v2041 = vlaneseq
    %v2042 = vshrl.u32 %v2041, 7
    %v2043 = vsub.s32 6, %v2042
    %v2044 = vrot.slane %v1782, %v2043
    %v2045 = vlaneseq
    %v2046 = vshrl.u32 %v2045, 7
    %v2047 = vsub.s32 6, %v2046
    %v2048 = vrot.slane %v1783, %v2047
    %v2049 = vmul.f32 %v2023, %v2028
    %v2050 = vmul.f32 %v2023, %v2032
    %v2051 = vmul.f32 %v2023, %v2036
    %v2052 = vmul.f32 %v2023, %v2040
    %v2053 = vmul.f32 %v2023, %v2044
    %v2054 = vmul.f32 %v2023, %v2048
    %v2055 = vadd.f32 %v2015, %v2049
    %v2056 = vadd.f32 %v2016, %v2050
    %v2057 = vadd.f32 %v2017, %v2051
    %v2058 = vadd.f32 %v2018, %v2052
    %v2059 = vadd.f32 %v2019, %v2053
    %v2060 = vadd.f32 %v2020, %v2054
    %2061 = vset.pattern.permute.xlu0 7
    %2062 = vperm.xlu0 %2061, %v1784
    %v2063 = vpop.permute.xlu0 %2062
    %v2065 = vlaneseq
    %v2066 = vshrl.u32 %v2065, 7
    %v2067 = vsub.s32 7, %v2066
    %v2068 = vrot.slane %v1778, %v2067
    %v2069 = vlaneseq
    %v2070 = vshrl.u32 %v2069, 7
    %v2071 = vsub.s32 7, %v2070
    %v2072 = vrot.slane %v1779, %v2071
    %v2073 = vlaneseq
    %v2074 = vshrl.u32 %v2073, 7
    %v2075 = vsub.s32 7, %v2074
    %v2076 = vrot.slane %v1780, %v2075
    %v2077 = vlaneseq
    %v2078 = vshrl.u32 %v2077, 7
    %v2079 = vsub.s32 7, %v2078
    %v2080 = vrot.slane %v1781, %v2079
    %v2081 = vlaneseq
    %v2082 = vshrl.u32 %v2081, 7
    %v2083 = vsub.s32 7, %v2082
    %v2084 = vrot.slane %v1782, %v2083
    %v2085 = vlaneseq
    %v2086 = vshrl.u32 %v2085, 7
    %v2087 = vsub.s32 7, %v2086
    %v2088 = vrot.slane %v1783, %v2087
    %v2089 = vmul.f32 %v2063, %v2068
    %v2090 = vmul.f32 %v2063, %v2072
    %v2091 = vmul.f32 %v2063, %v2076
    %v2092 = vmul.f32 %v2063, %v2080
    %v2093 = vmul.f32 %v2063, %v2084
    %v2094 = vmul.f32 %v2063, %v2088
    %v2095 = vadd.f32 %v2055, %v2089
    %v2096 = vadd.f32 %v2056, %v2090
    %v2097 = vadd.f32 %v2057, %v2091
    %v2098 = vadd.f32 %v2058, %v2092
    %v2099 = vadd.f32 %v2059, %v2093
    %v2100 = vadd.f32 %v2060, %v2094
    %2102 = vset.pattern.permute.xlu0 0
    %2103 = vperm.xlu0 %2102, %v1785
    %v2104 = vpop.permute.xlu0 %2103
    %v2106 = vadd.f32 %v2095, %v2104
    %v2107 = vadd.f32 %v2096, %v2104
    %v2108 = vadd.f32 %v2097, %v2104
    %v2109 = vadd.f32 %v2098, %v2104
    %v2110 = vadd.f32 %v2099, %v2104
    %v2111 = vadd.f32 %v2100, %v2104
    %vm2112 = vcmp.ge.f32.partialorder %v2106, 0.0
    %vm2113 = vcmp.ge.f32.partialorder %v2107, 0.0
    %vm2114 = vcmp.ge.f32.partialorder %v2108, 0.0
    %vm2115 = vcmp.ge.f32.partialorder %v2109, 0.0
    %vm2116 = vcmp.ge.f32.partialorder %v2110, 0.0
    %vm2117 = vcmp.ge.f32.partialorder %v2111, 0.0
    %v2118 = vmul.f32 %v2106, 0.2
    %v2119 = vmul.f32 %v2107, 0.2
    %v2120 = vmul.f32 %v2108, 0.2
    %v2121 = vmul.f32 %v2109, 0.2
    %v2122 = vmul.f32 %v2110, 0.2
    %v2123 = vmul.f32 %v2111, 0.2
    %v2124 = vsel %vm2112, %v2106, %v2118
    %v2125 = vsel %vm2113, %v2107, %v2119
    %v2126 = vsel %vm2114, %v2108, %v2120
    %v2127 = vsel %vm2115, %v2109, %v2121
    %v2128 = vsel %vm2116, %v2110, %v2122
    %v2129 = vsel %vm2117, %v2111, %v2123
    %2136 = vrot.lane.b32.xlu0 %v2124, 17
    %v2137 = vpop.permute.xlu0 %2136
    %2138 = vrot.lane.b32.xlu0 %v2125, 17
    %v2139 = vpop.permute.xlu0 %2138
    %2140 = vrot.lane.b32.xlu0 %v2126, 17
    %v2141 = vpop.permute.xlu0 %2140
    %2142 = vrot.lane.b32.xlu0 %v2127, 17
    %v2143 = vpop.permute.xlu0 %2142
    %2144 = vrot.lane.b32.xlu0 %v2128, 17
    %v2145 = vpop.permute.xlu0 %2144
    %2146 = vrot.lane.b32.xlu0 %v2129, 17
    %v2147 = vpop.permute.xlu0 %2146
    %v2148 = vsel %vm1377, %v2137, %v2139
    %v2149 = vsel %vm1377, %v2139, %v2141
    %v2150 = vsel %vm1377, %v2143, %v2145
    %v2151 = vsel %vm1377, %v2145, %v2147
    %v2156 = vadd.f32 %v47, %v2148
    %v2157 = vadd.f32 %v48, %v2149
    %v2158 = vadd.f32 %v49, %v2150
    %v2159 = vadd.f32 %v50, %v2151
    %2160 = vst [vmem:[#allocation3] sm:$0xff] %v2156
    %2161 = vst [vmem:[#allocation3 + $0x8] sm:$0xff] %v2157
    %2162 = vst [vmem:[#allocation3 + $0x10] sm:$0xff] %v2158
    %2163 = vst [vmem:[#allocation3 + $0x18] sm:$0xff] %v2159
    // Predicated region
    $region54: #{tpu_custom_call.1} parent=1 // pred_check
      _
    $region55: #{tpu_custom_call.1} parent=1 // pred_check_branch
      %2165 = sbr.rel (0) target = $region57
    $region56: #{tpu_custom_call.1} parent=1 // pred_region
      %s2167 = ssub.s32 512, 512
      %2168 = vsyncadd [#allocation4], %s2167
      %s2169 = sshll.u32 [#allocation3], 4
      %s2170 = int_to_ptr.vmem [resolvable:$true] %s2169
      %2175 = dma.vmem_to_hbm [thread:$0]  %s2170, 512, %s13, [#allocation4], 256, 256, 16
    $region57: #{tpu_custom_call.1} parent=1 // pred_fallthru
      _
    // Predicated region
    $region58: #{tpu_custom_call.1} parent=1 // pred_check
      _
    $region59: #{tpu_custom_call.1} parent=1 // pred_check_branch
      %2177 = sbr.rel (0) target = $region61
    $region60: #{tpu_custom_call.1} parent=1 // pred_region
      %2178 = dma.done [#allocation4], 512
    $region61: #{tpu_custom_call.1} parent=1 // pred_fallthru
      _
    %2179 = vsyncpa [#allocation4], 1

</llo_original>
